<compile_context>
chip_gen: v7x
topology: tpu7x:2x2x1
jax: 0.10.0
libtpu: 0.0.40
codegen_flags: <defaults>
</compile_context>

<pallas_src>
import functools

import jax
import jax.numpy as jnp
from jax.experimental import pallas as pl
from jax.experimental.pallas import tpu as pltpu

C1 = 5            # fc1_val out channels (c in the PyTorch module)
C2 = 2 * C1       # fc2_val out channels (c * 2)
K = 2             # Conv1d kernel size
LANE = 128        # TPU lane width
SUBLANE = 8       # TPU sublane width

# packed-parameter layout (1-D f32 vector living in SMEM)
W1_OFF = 0                        # (C1, K)    conv1 weight, flat c*K + k
B1_OFF = W1_OFF + C1 * K          # (C1,)      conv1 bias
W2_OFF = B1_OFF + C1              # (C2,C1,K)  conv2 weight, flat (o*C1+c)*K + k
B2_OFF = W2_OFF + C2 * C1 * K     # (C2,)      conv2 bias
N_PARAMS = B2_OFF + C2            # = 125


def _round_up(n, m):
    return (n + m - 1) // m * m


def _dueling_conv_kernel(params_ref, x_ref, out_ref, pack_ref):
    """conv1d(1->C1,k=2)+ReLU -> conv1d(C1->C2,k=2)+ReLU, batch on lanes.

    params_ref : (N_PARAMS,) f32 in SMEM (packed weights / biases)
    x_ref      : (cps, S, LANE)   one 128-row batch chunk per leading index
    out_ref    : (cps, LANE, F)   final row-major layout, F = C2 * (S - 2)
    pack_ref   : (F_pad, LANE)    VMEM scratch used to pack conv2 rows before
                                  the tile-aligned in-kernel transpose
    """
    cps, s, _ = x_ref.shape
    l1 = s - 1
    l2 = s - 2
    f = C2 * l2
    f_pad = pack_ref.shape[0]            # round_up(f, 8)

    # ---- hoisted SMEM scalar reads (loop-invariant; no per-chunk sld) ----
    w1s = [(params_ref[W1_OFF + c * K], params_ref[W1_OFF + c * K + 1])
           for c in range(C1)]
    b1s = [params_ref[B1_OFF + c] for c in range(C1)]
    w2s = [[(params_ref[W2_OFF + (o * C1 + c) * K],
             params_ref[W2_OFF + (o * C1 + c) * K + 1]) for c in range(C1)]
           for o in range(C2)]
    b2s = [params_ref[B2_OFF + o] for o in range(C2)]

    def chunk(j, carry):
        x = x_ref[j]                      # (S, LANE), batch on lanes
        x0 = x[0:l1, :]                   # x[t]
        x1 = x[1:s, :]                    # x[t+1]

        # conv1 (1 -> C1, k=2) + ReLU, computed once over all L1 positions.
        # The two taps conv2 needs are shifted slices (XLU), not recompute.
        h1 = [jnp.maximum(w1s[c][0] * x0 + w1s[c][1] * x1 + b1s[c], 0.0)
              for c in range(C1)]         # each (L1, LANE)
        h1a = [h[0:l2, :] for h in h1]    # h1[c][t]
        h1b = [h[1:l1, :] for h in h1]    # h1[c][t+1]

        # conv2 (C1 -> C2, k=2) + ReLU: unrolled VPU multiply-adds (no MXU).
        # Rows are packed into VMEM scratch in (o*L2 + t) order.
        for o in range(C2):
            acc = w2s[o][0][0] * h1a[0] + w2s[o][0][1] * h1b[0]
            for c in range(1, C1):
                acc = acc + w2s[o][c][0] * h1a[c] + w2s[o][c][1] * h1b[c]
            pack_ref[o * l2:(o + 1) * l2, :] = jnp.maximum(acc + b2s[o], 0.0)

        # In-kernel transpose to the final layout (batch on sublanes, features
        # on lanes), done in tile-aligned <=128-row blocks; stores are at
        # lane offsets that are multiples of 128 (last block width-masked).
        for r0 in range(0, f, LANE):
            rows = min(LANE, f_pad - r0)              # multiple of 8
            cols = min(LANE, f - r0)
            blk_t = pack_ref[r0:r0 + rows, :].T       # (LANE, rows), XLU
            out_ref[j, :, r0:r0 + cols] = blk_t[:, :cols]
        return carry

    jax.lax.fori_loop(0, cps, chunk, 0, unroll=min(2, cps))


@functools.partial(jax.jit, static_argnames=("b_tile",))
def conv_dueling_forward(x, w1, b1, w2, b2, *, b_tile=8192):
    """x: (B, state_size) f32. w1: (C1,1,K), b1: (C1,), w2: (C2,C1,K), b2: (C2,)."""
    B, S = x.shape
    if S < 3:
        raise ValueError("state_size must be >= 3 for two k=2 Conv1d layers")
    L2 = S - 2
    F = C2 * L2
    F_pad = _round_up(F, SUBLANE)

    # Batch tiling: pad B to 128-lane chunks, then split the chunks over
    # >= 2 grid steps when possible (v7x megacore) with < 1 grid-step of waste.
    nb = _round_up(B, LANE) // LANE              # 128-row chunks actually needed
    max_cps = max(1, b_tile // LANE)
    n_steps = max(-(-nb // max_cps), 2 if nb >= 2 else 1)
    cps = -(-nb // n_steps)                      # chunks per grid step
    nb_pad = n_steps * cps
    B_pad = nb_pad * LANE

    # Pack the five tiny parameter tensors into one SMEM-resident vector.
    params = jnp.concatenate([
        w1.reshape(-1).astype(jnp.float32),      # (C1*K,)
        b1.reshape(-1).astype(jnp.float32),      # (C1,)
        w2.reshape(-1).astype(jnp.float32),      # (C2*C1*K,)
        b2.reshape(-1).astype(jnp.float32),      # (C2,)
    ])

    # batch -> lanes: (B, S) -> (nb_pad, S, LANE); zero-pad rows are discarded.
    x_pad = jnp.pad(x.astype(jnp.float32), ((0, B_pad - B), (0, 0)))
    x3 = x_pad.reshape(nb_pad, LANE, S).transpose(0, 2, 1)

    flops = B_pad * (C1 * (S - 1) * 5 + C2 * L2 * (C1 * K * 2 + 2))
    bytes_accessed = 4 * (B_pad * S + B_pad * F + N_PARAMS)

    out3 = pl.pallas_call(
        _dueling_conv_kernel,
        out_shape=jax.ShapeDtypeStruct((nb_pad, LANE, F), jnp.float32),
        grid=(n_steps,),
        in_specs=[
            pl.BlockSpec(memory_space=pltpu.MemorySpace.SMEM),    # packed params
            pl.BlockSpec((cps, S, LANE), lambda g: (g, 0, 0)),    # x chunks
        ],
        out_specs=pl.BlockSpec((cps, LANE, F), lambda g: (g, 0, 0)),
        scratch_shapes=[pltpu.VMEM((F_pad, LANE), jnp.float32)],
        compiler_params=pltpu.CompilerParams(
            dimension_semantics=("parallel",)),
        cost_estimate=pl.CostEstimate(
            flops=flops, transcendentals=0, bytes_accessed=bytes_accessed),
    )(params, x3)

    # (nb_pad, LANE, F) -> (B_pad, F) is a free row-major view; drop pad rows.
    out = out3.reshape(B_pad, F)
    return out[:B]


def _ref_forward(x, w1, b1, w2, b2):
    """Pure-JAX reference of the (intended) forward pass for verification."""
    xw = jnp.stack([x[:, :-1], x[:, 1:]], axis=-1)              # (B, L1, K)
    h1 = jnp.einsum('btk,ck->bct', xw, w1[:, 0, :]) + b1[None, :, None]
    h1 = jnp.maximum(h1, 0.0)
    h1w = jnp.stack([h1[:, :, :-1], h1[:, :, 1:]], axis=-1)     # (B, C1, L2, K)
    h2 = jnp.einsum('bitk,oik->bot', h1w, w2) + b2[None, :, None]
    h2 = jnp.maximum(h2, 0.0)
    return h2.reshape(x.shape[0], -1)


if __name__ == "__main__":
    key = jax.random.PRNGKey(0)
    batch = 2
    state_size = 16          # small, consistent with Conv1d over the state vector
    action_size = 4
    hidsize1 = hidsize2 = 32

    keys = jax.random.split(key, 8)

    # Conv1d params, PyTorch-style uniform(-1/sqrt(fan_in), 1/sqrt(fan_in))
    bnd1 = 1.0 / (1 * K) ** 0.5
    w1 = jax.random.uniform(keys[0], (C1, 1, K), jnp.float32, -bnd1, bnd1)
    b1 = jax.random.uniform(keys[1], (C1,), jnp.float32, -bnd1, bnd1)
    bnd2 = 1.0 / (C1 * K) ** 0.5
    w2 = jax.random.uniform(keys[2], (C2, C1, K), jnp.float32, -bnd2, bnd2)
    b2 = jax.random.uniform(keys[3], (C2,), jnp.float32, -bnd2, bnd2)

    # TODO(synk): fc1_adv / fc2_adv / fc3_adv (and the dynamically created
    #             out_val) are defined in __init__ but never applied in
    #             forward(); kept only for module fidelity, not in the kernel.
    fc1_adv_w = jax.random.uniform(keys[4], (hidsize1, state_size), jnp.float32)
    fc2_adv_w = jax.random.uniform(keys[5], (hidsize2, hidsize1), jnp.float32)
    fc3_adv_w = jax.random.uniform(keys[6], (action_size, hidsize2), jnp.float32)

    x = jax.random.normal(keys[7], (batch, state_size), jnp.float32)

    out = conv_dueling_forward(x, w1, b1, w2, b2)
    out = jax.block_until_ready(out)

    ref = _ref_forward(x, w1, b1, w2, b2)
    assert out.shape == (batch, C2 * (state_size - 2)), out.shape
    assert bool(jnp.allclose(out, ref, atol=1e-5, rtol=1e-5)), "mismatch vs reference"

    print("KERNEL_OK")
</pallas_src>

<mosaic_0001>
module attributes {stable_mosaic.version = 11 : i64} {
  func.func @_dueling_conv_kernel(%arg0: i32, %arg1: memref<125xf32, #tpu.memory_space<smem>>, %arg2: memref<1x16x128xf32, #tpu.memory_space<vmem>>, %arg3: memref<1x128x140xf32, #tpu.memory_space<vmem>>, %arg4: memref<144x128xf32, #tpu.memory_space<vmem>>) attributes {dimension_semantics = [#tpu.dimension_semantics<parallel>], iteration_bounds = array<i64: 1>, scalar_prefetch = 0 : i64, scratch_operands = 1 : i64, tpu.core_type = #tpu.core_type<tc>, window_params = [{transform_indices = @transform_0, window_bounds = array<i64: 125>}, {transform_indices = @transform_1, window_bounds = array<i64: 1, 16, 128>}, {transform_indices = @transform_2, window_bounds = array<i64: 1, 128, 140>}]} {
    %c0 = arith.constant 0 : index
    %0 = memref.load %arg1[%c0] : memref<125xf32, #tpu.memory_space<smem>>
    %c1 = arith.constant 1 : index
    %1 = memref.load %arg1[%c1] : memref<125xf32, #tpu.memory_space<smem>>
    %c2 = arith.constant 2 : index
    %2 = memref.load %arg1[%c2] : memref<125xf32, #tpu.memory_space<smem>>
    %c3 = arith.constant 3 : index
    %3 = memref.load %arg1[%c3] : memref<125xf32, #tpu.memory_space<smem>>
    %c4 = arith.constant 4 : index
    %4 = memref.load %arg1[%c4] : memref<125xf32, #tpu.memory_space<smem>>
    %c5 = arith.constant 5 : index
    %5 = memref.load %arg1[%c5] : memref<125xf32, #tpu.memory_space<smem>>
    %c6 = arith.constant 6 : index
    %6 = memref.load %arg1[%c6] : memref<125xf32, #tpu.memory_space<smem>>
    %c7 = arith.constant 7 : index
    %7 = memref.load %arg1[%c7] : memref<125xf32, #tpu.memory_space<smem>>
    %c8 = arith.constant 8 : index
    %8 = memref.load %arg1[%c8] : memref<125xf32, #tpu.memory_space<smem>>
    %c9 = arith.constant 9 : index
    %9 = memref.load %arg1[%c9] : memref<125xf32, #tpu.memory_space<smem>>
    %c10 = arith.constant 10 : index
    %10 = memref.load %arg1[%c10] : memref<125xf32, #tpu.memory_space<smem>>
    %c11 = arith.constant 11 : index
    %11 = memref.load %arg1[%c11] : memref<125xf32, #tpu.memory_space<smem>>
    %c12 = arith.constant 12 : index
    %12 = memref.load %arg1[%c12] : memref<125xf32, #tpu.memory_space<smem>>
    %c13 = arith.constant 13 : index
    %13 = memref.load %arg1[%c13] : memref<125xf32, #tpu.memory_space<smem>>
    %c14 = arith.constant 14 : index
    %14 = memref.load %arg1[%c14] : memref<125xf32, #tpu.memory_space<smem>>
    %c15 = arith.constant 15 : index
    %15 = memref.load %arg1[%c15] : memref<125xf32, #tpu.memory_space<smem>>
    %c16 = arith.constant 16 : index
    %16 = memref.load %arg1[%c16] : memref<125xf32, #tpu.memory_space<smem>>
    %c17 = arith.constant 17 : index
    %17 = memref.load %arg1[%c17] : memref<125xf32, #tpu.memory_space<smem>>
    %c18 = arith.constant 18 : index
    %18 = memref.load %arg1[%c18] : memref<125xf32, #tpu.memory_space<smem>>
    %c19 = arith.constant 19 : index
    %19 = memref.load %arg1[%c19] : memref<125xf32, #tpu.memory_space<smem>>
    %c20 = arith.constant 20 : index
    %20 = memref.load %arg1[%c20] : memref<125xf32, #tpu.memory_space<smem>>
    %c21 = arith.constant 21 : index
    %21 = memref.load %arg1[%c21] : memref<125xf32, #tpu.memory_space<smem>>
    %c22 = arith.constant 22 : index
    %22 = memref.load %arg1[%c22] : memref<125xf32, #tpu.memory_space<smem>>
    %c23 = arith.constant 23 : index
    %23 = memref.load %arg1[%c23] : memref<125xf32, #tpu.memory_space<smem>>
    %c24 = arith.constant 24 : index
    %24 = memref.load %arg1[%c24] : memref<125xf32, #tpu.memory_space<smem>>
    %c25 = arith.constant 25 : index
    %25 = memref.load %arg1[%c25] : memref<125xf32, #tpu.memory_space<smem>>
    %c26 = arith.constant 26 : index
    %26 = memref.load %arg1[%c26] : memref<125xf32, #tpu.memory_space<smem>>
    %c27 = arith.constant 27 : index
    %27 = memref.load %arg1[%c27] : memref<125xf32, #tpu.memory_space<smem>>
    %c28 = arith.constant 28 : index
    %28 = memref.load %arg1[%c28] : memref<125xf32, #tpu.memory_space<smem>>
    %c29 = arith.constant 29 : index
    %29 = memref.load %arg1[%c29] : memref<125xf32, #tpu.memory_space<smem>>
    %c30 = arith.constant 30 : index
    %30 = memref.load %arg1[%c30] : memref<125xf32, #tpu.memory_space<smem>>
    %c31 = arith.constant 31 : index
    %31 = memref.load %arg1[%c31] : memref<125xf32, #tpu.memory_space<smem>>
    %c32 = arith.constant 32 : index
    %32 = memref.load %arg1[%c32] : memref<125xf32, #tpu.memory_space<smem>>
    %c33 = arith.constant 33 : index
    %33 = memref.load %arg1[%c33] : memref<125xf32, #tpu.memory_space<smem>>
    %c34 = arith.constant 34 : index
    %34 = memref.load %arg1[%c34] : memref<125xf32, #tpu.memory_space<smem>>
    %c35 = arith.constant 35 : index
    %35 = memref.load %arg1[%c35] : memref<125xf32, #tpu.memory_space<smem>>
    %c36 = arith.constant 36 : index
    %36 = memref.load %arg1[%c36] : memref<125xf32, #tpu.memory_space<smem>>
    %c37 = arith.constant 37 : index
    %37 = memref.load %arg1[%c37] : memref<125xf32, #tpu.memory_space<smem>>
    %c38 = arith.constant 38 : index
    %38 = memref.load %arg1[%c38] : memref<125xf32, #tpu.memory_space<smem>>
    %c39 = arith.constant 39 : index
    %39 = memref.load %arg1[%c39] : memref<125xf32, #tpu.memory_space<smem>>
    %c40 = arith.constant 40 : index
    %40 = memref.load %arg1[%c40] : memref<125xf32, #tpu.memory_space<smem>>
    %c41 = arith.constant 41 : index
    %41 = memref.load %arg1[%c41] : memref<125xf32, #tpu.memory_space<smem>>
    %c42 = arith.constant 42 : index
    %42 = memref.load %arg1[%c42] : memref<125xf32, #tpu.memory_space<smem>>
    %c43 = arith.constant 43 : index
    %43 = memref.load %arg1[%c43] : memref<125xf32, #tpu.memory_space<smem>>
    %c44 = arith.constant 44 : index
    %44 = memref.load %arg1[%c44] : memref<125xf32, #tpu.memory_space<smem>>
    %c45 = arith.constant 45 : index
    %45 = memref.load %arg1[%c45] : memref<125xf32, #tpu.memory_space<smem>>
    %c46 = arith.constant 46 : index
    %46 = memref.load %arg1[%c46] : memref<125xf32, #tpu.memory_space<smem>>
    %c47 = arith.constant 47 : index
    %47 = memref.load %arg1[%c47] : memref<125xf32, #tpu.memory_space<smem>>
    %c48 = arith.constant 48 : index
    %48 = memref.load %arg1[%c48] : memref<125xf32, #tpu.memory_space<smem>>
    %c49 = arith.constant 49 : index
    %49 = memref.load %arg1[%c49] : memref<125xf32, #tpu.memory_space<smem>>
    %c50 = arith.constant 50 : index
    %50 = memref.load %arg1[%c50] : memref<125xf32, #tpu.memory_space<smem>>
    %c51 = arith.constant 51 : index
    %51 = memref.load %arg1[%c51] : memref<125xf32, #tpu.memory_space<smem>>
    %c52 = arith.constant 52 : index
    %52 = memref.load %arg1[%c52] : memref<125xf32, #tpu.memory_space<smem>>
    %c53 = arith.constant 53 : index
    %53 = memref.load %arg1[%c53] : memref<125xf32, #tpu.memory_space<smem>>
    %c54 = arith.constant 54 : index
    %54 = memref.load %arg1[%c54] : memref<125xf32, #tpu.memory_space<smem>>
    %c55 = arith.constant 55 : index
    %55 = memref.load %arg1[%c55] : memref<125xf32, #tpu.memory_space<smem>>
    %c56 = arith.constant 56 : index
    %56 = memref.load %arg1[%c56] : memref<125xf32, #tpu.memory_space<smem>>
    %c57 = arith.constant 57 : index
    %57 = memref.load %arg1[%c57] : memref<125xf32, #tpu.memory_space<smem>>
    %c58 = arith.constant 58 : index
    %58 = memref.load %arg1[%c58] : memref<125xf32, #tpu.memory_space<smem>>
    %c59 = arith.constant 59 : index
    %59 = memref.load %arg1[%c59] : memref<125xf32, #tpu.memory_space<smem>>
    %c60 = arith.constant 60 : index
    %60 = memref.load %arg1[%c60] : memref<125xf32, #tpu.memory_space<smem>>
    %c61 = arith.constant 61 : index
    %61 = memref.load %arg1[%c61] : memref<125xf32, #tpu.memory_space<smem>>
    %c62 = arith.constant 62 : index
    %62 = memref.load %arg1[%c62] : memref<125xf32, #tpu.memory_space<smem>>
    %c63 = arith.constant 63 : index
    %63 = memref.load %arg1[%c63] : memref<125xf32, #tpu.memory_space<smem>>
    %c64 = arith.constant 64 : index
    %64 = memref.load %arg1[%c64] : memref<125xf32, #tpu.memory_space<smem>>
    %c65 = arith.constant 65 : index
    %65 = memref.load %arg1[%c65] : memref<125xf32, #tpu.memory_space<smem>>
    %c66 = arith.constant 66 : index
    %66 = memref.load %arg1[%c66] : memref<125xf32, #tpu.memory_space<smem>>
    %c67 = arith.constant 67 : index
    %67 = memref.load %arg1[%c67] : memref<125xf32, #tpu.memory_space<smem>>
    %c68 = arith.constant 68 : index
    %68 = memref.load %arg1[%c68] : memref<125xf32, #tpu.memory_space<smem>>
    %c69 = arith.constant 69 : index
    %69 = memref.load %arg1[%c69] : memref<125xf32, #tpu.memory_space<smem>>
    %c70 = arith.constant 70 : index
    %70 = memref.load %arg1[%c70] : memref<125xf32, #tpu.memory_space<smem>>
    %c71 = arith.constant 71 : index
    %71 = memref.load %arg1[%c71] : memref<125xf32, #tpu.memory_space<smem>>
    %c72 = arith.constant 72 : index
    %72 = memref.load %arg1[%c72] : memref<125xf32, #tpu.memory_space<smem>>
    %c73 = arith.constant 73 : index
    %73 = memref.load %arg1[%c73] : memref<125xf32, #tpu.memory_space<smem>>
    %c74 = arith.constant 74 : index
    %74 = memref.load %arg1[%c74] : memref<125xf32, #tpu.memory_space<smem>>
    %c75 = arith.constant 75 : index
    %75 = memref.load %arg1[%c75] : memref<125xf32, #tpu.memory_space<smem>>
    %c76 = arith.constant 76 : index
    %76 = memref.load %arg1[%c76] : memref<125xf32, #tpu.memory_space<smem>>
    %c77 = arith.constant 77 : index
    %77 = memref.load %arg1[%c77] : memref<125xf32, #tpu.memory_space<smem>>
    %c78 = arith.constant 78 : index
    %78 = memref.load %arg1[%c78] : memref<125xf32, #tpu.memory_space<smem>>
    %c79 = arith.constant 79 : index
    %79 = memref.load %arg1[%c79] : memref<125xf32, #tpu.memory_space<smem>>
    %c80 = arith.constant 80 : index
    %80 = memref.load %arg1[%c80] : memref<125xf32, #tpu.memory_space<smem>>
    %c81 = arith.constant 81 : index
    %81 = memref.load %arg1[%c81] : memref<125xf32, #tpu.memory_space<smem>>
    %c82 = arith.constant 82 : index
    %82 = memref.load %arg1[%c82] : memref<125xf32, #tpu.memory_space<smem>>
    %c83 = arith.constant 83 : index
    %83 = memref.load %arg1[%c83] : memref<125xf32, #tpu.memory_space<smem>>
    %c84 = arith.constant 84 : index
    %84 = memref.load %arg1[%c84] : memref<125xf32, #tpu.memory_space<smem>>
    %c85 = arith.constant 85 : index
    %85 = memref.load %arg1[%c85] : memref<125xf32, #tpu.memory_space<smem>>
    %c86 = arith.constant 86 : index
    %86 = memref.load %arg1[%c86] : memref<125xf32, #tpu.memory_space<smem>>
    %c87 = arith.constant 87 : index
    %87 = memref.load %arg1[%c87] : memref<125xf32, #tpu.memory_space<smem>>
    %c88 = arith.constant 88 : index
    %88 = memref.load %arg1[%c88] : memref<125xf32, #tpu.memory_space<smem>>
    %c89 = arith.constant 89 : index
    %89 = memref.load %arg1[%c89] : memref<125xf32, #tpu.memory_space<smem>>
    %c90 = arith.constant 90 : index
    %90 = memref.load %arg1[%c90] : memref<125xf32, #tpu.memory_space<smem>>
    %c91 = arith.constant 91 : index
    %91 = memref.load %arg1[%c91] : memref<125xf32, #tpu.memory_space<smem>>
    %c92 = arith.constant 92 : index
    %92 = memref.load %arg1[%c92] : memref<125xf32, #tpu.memory_space<smem>>
    %c93 = arith.constant 93 : index
    %93 = memref.load %arg1[%c93] : memref<125xf32, #tpu.memory_space<smem>>
    %c94 = arith.constant 94 : index
    %94 = memref.load %arg1[%c94] : memref<125xf32, #tpu.memory_space<smem>>
    %c95 = arith.constant 95 : index
    %95 = memref.load %arg1[%c95] : memref<125xf32, #tpu.memory_space<smem>>
    %c96 = arith.constant 96 : index
    %96 = memref.load %arg1[%c96] : memref<125xf32, #tpu.memory_space<smem>>
    %c97 = arith.constant 97 : index
    %97 = memref.load %arg1[%c97] : memref<125xf32, #tpu.memory_space<smem>>
    %c98 = arith.constant 98 : index
    %98 = memref.load %arg1[%c98] : memref<125xf32, #tpu.memory_space<smem>>
    %c99 = arith.constant 99 : index
    %99 = memref.load %arg1[%c99] : memref<125xf32, #tpu.memory_space<smem>>
    %c100 = arith.constant 100 : index
    %100 = memref.load %arg1[%c100] : memref<125xf32, #tpu.memory_space<smem>>
    %c101 = arith.constant 101 : index
    %101 = memref.load %arg1[%c101] : memref<125xf32, #tpu.memory_space<smem>>
    %c102 = arith.constant 102 : index
    %102 = memref.load %arg1[%c102] : memref<125xf32, #tpu.memory_space<smem>>
    %c103 = arith.constant 103 : index
    %103 = memref.load %arg1[%c103] : memref<125xf32, #tpu.memory_space<smem>>
    %c104 = arith.constant 104 : index
    %104 = memref.load %arg1[%c104] : memref<125xf32, #tpu.memory_space<smem>>
    %c105 = arith.constant 105 : index
    %105 = memref.load %arg1[%c105] : memref<125xf32, #tpu.memory_space<smem>>
    %c106 = arith.constant 106 : index
    %106 = memref.load %arg1[%c106] : memref<125xf32, #tpu.memory_space<smem>>
    %c107 = arith.constant 107 : index
    %107 = memref.load %arg1[%c107] : memref<125xf32, #tpu.memory_space<smem>>
    %c108 = arith.constant 108 : index
    %108 = memref.load %arg1[%c108] : memref<125xf32, #tpu.memory_space<smem>>
    %c109 = arith.constant 109 : index
    %109 = memref.load %arg1[%c109] : memref<125xf32, #tpu.memory_space<smem>>
    %c110 = arith.constant 110 : index
    %110 = memref.load %arg1[%c110] : memref<125xf32, #tpu.memory_space<smem>>
    %c111 = arith.constant 111 : index
    %111 = memref.load %arg1[%c111] : memref<125xf32, #tpu.memory_space<smem>>
    %c112 = arith.constant 112 : index
    %112 = memref.load %arg1[%c112] : memref<125xf32, #tpu.memory_space<smem>>
    %c113 = arith.constant 113 : index
    %113 = memref.load %arg1[%c113] : memref<125xf32, #tpu.memory_space<smem>>
    %c114 = arith.constant 114 : index
    %114 = memref.load %arg1[%c114] : memref<125xf32, #tpu.memory_space<smem>>
    %c115 = arith.constant 115 : index
    %115 = memref.load %arg1[%c115] : memref<125xf32, #tpu.memory_space<smem>>
    %c116 = arith.constant 116 : index
    %116 = memref.load %arg1[%c116] : memref<125xf32, #tpu.memory_space<smem>>
    %c117 = arith.constant 117 : index
    %117 = memref.load %arg1[%c117] : memref<125xf32, #tpu.memory_space<smem>>
    %c118 = arith.constant 118 : index
    %118 = memref.load %arg1[%c118] : memref<125xf32, #tpu.memory_space<smem>>
    %c119 = arith.constant 119 : index
    %119 = memref.load %arg1[%c119] : memref<125xf32, #tpu.memory_space<smem>>
    %c120 = arith.constant 120 : index
    %120 = memref.load %arg1[%c120] : memref<125xf32, #tpu.memory_space<smem>>
    %c121 = arith.constant 121 : index
    %121 = memref.load %arg1[%c121] : memref<125xf32, #tpu.memory_space<smem>>
    %c122 = arith.constant 122 : index
    %122 = memref.load %arg1[%c122] : memref<125xf32, #tpu.memory_space<smem>>
    %c123 = arith.constant 123 : index
    %123 = memref.load %arg1[%c123] : memref<125xf32, #tpu.memory_space<smem>>
    %c124 = arith.constant 124 : index
    %124 = memref.load %arg1[%c124] : memref<125xf32, #tpu.memory_space<smem>>
    %c0_i32 = arith.constant 0 : i32
    %125 = arith.index_cast %c0_i32 : i32 to index
    %c0_0 = arith.constant 0 : index
    %c0_1 = arith.constant 0 : index
    %126 = vector.load %arg2[%125, %c0_0, %c0_1] : memref<1x16x128xf32, #tpu.memory_space<vmem>>, vector<1x16x128xf32>
    %127 = vector.shape_cast %126 : vector<1x16x128xf32> to vector<16x128xf32>
    %128 = vector.extract_strided_slice %127 {offsets = [0, 0], sizes = [15, 128], strides = [1, 1]} : vector<16x128xf32> to vector<15x128xf32>
    %129 = vector.extract_strided_slice %127 {offsets = [1, 0], sizes = [15, 128], strides = [1, 1]} : vector<16x128xf32> to vector<15x128xf32>
    %130 = vector.broadcast %0 : f32 to vector<15x128xf32>
    %131 = arith.mulf %130, %128 : vector<15x128xf32>
    %132 = vector.broadcast %1 : f32 to vector<15x128xf32>
    %133 = arith.mulf %132, %129 : vector<15x128xf32>
    %134 = arith.addf %131, %133 : vector<15x128xf32>
    %135 = vector.broadcast %10 : f32 to vector<15x128xf32>
    %136 = arith.addf %134, %135 : vector<15x128xf32>
    %cst = arith.constant 0.000000e+00 : f32
    %137 = vector.broadcast %cst : f32 to vector<15x128xf32>
    %138 = arith.maximumf %136, %137 : vector<15x128xf32>
    %139 = vector.broadcast %2 : f32 to vector<15x128xf32>
    %140 = arith.mulf %139, %128 : vector<15x128xf32>
    %141 = vector.broadcast %3 : f32 to vector<15x128xf32>
    %142 = arith.mulf %141, %129 : vector<15x128xf32>
    %143 = arith.addf %140, %142 : vector<15x128xf32>
    %144 = vector.broadcast %11 : f32 to vector<15x128xf32>
    %145 = arith.addf %143, %144 : vector<15x128xf32>
    %cst_2 = arith.constant 0.000000e+00 : f32
    %146 = vector.broadcast %cst_2 : f32 to vector<15x128xf32>
    %147 = arith.maximumf %145, %146 : vector<15x128xf32>
    %148 = vector.broadcast %4 : f32 to vector<15x128xf32>
    %149 = arith.mulf %148, %128 : vector<15x128xf32>
    %150 = vector.broadcast %5 : f32 to vector<15x128xf32>
    %151 = arith.mulf %150, %129 : vector<15x128xf32>
    %152 = arith.addf %149, %151 : vector<15x128xf32>
    %153 = vector.broadcast %12 : f32 to vector<15x128xf32>
    %154 = arith.addf %152, %153 : vector<15x128xf32>
    %cst_3 = arith.constant 0.000000e+00 : f32
    %155 = vector.broadcast %cst_3 : f32 to vector<15x128xf32>
    %156 = arith.maximumf %154, %155 : vector<15x128xf32>
    %157 = vector.broadcast %6 : f32 to vector<15x128xf32>
    %158 = arith.mulf %157, %128 : vector<15x128xf32>
    %159 = vector.broadcast %7 : f32 to vector<15x128xf32>
    %160 = arith.mulf %159, %129 : vector<15x128xf32>
    %161 = arith.addf %158, %160 : vector<15x128xf32>
    %162 = vector.broadcast %13 : f32 to vector<15x128xf32>
    %163 = arith.addf %161, %162 : vector<15x128xf32>
    %cst_4 = arith.constant 0.000000e+00 : f32
    %164 = vector.broadcast %cst_4 : f32 to vector<15x128xf32>
    %165 = arith.maximumf %163, %164 : vector<15x128xf32>
    %166 = vector.broadcast %8 : f32 to vector<15x128xf32>
    %167 = arith.mulf %166, %128 : vector<15x128xf32>
    %168 = vector.broadcast %9 : f32 to vector<15x128xf32>
    %169 = arith.mulf %168, %129 : vector<15x128xf32>
    %170 = arith.addf %167, %169 : vector<15x128xf32>
    %171 = vector.broadcast %14 : f32 to vector<15x128xf32>
    %172 = arith.addf %170, %171 : vector<15x128xf32>
    %cst_5 = arith.constant 0.000000e+00 : f32
    %173 = vector.broadcast %cst_5 : f32 to vector<15x128xf32>
    %174 = arith.maximumf %172, %173 : vector<15x128xf32>
    %175 = vector.extract_strided_slice %138 {offsets = [0, 0], sizes = [14, 128], strides = [1, 1]} : vector<15x128xf32> to vector<14x128xf32>
    %176 = vector.extract_strided_slice %147 {offsets = [0, 0], sizes = [14, 128], strides = [1, 1]} : vector<15x128xf32> to vector<14x128xf32>
    %177 = vector.extract_strided_slice %156 {offsets = [0, 0], sizes = [14, 128], strides = [1, 1]} : vector<15x128xf32> to vector<14x128xf32>
    %178 = vector.extract_strided_slice %165 {offsets = [0, 0], sizes = [14, 128], strides = [1, 1]} : vector<15x128xf32> to vector<14x128xf32>
    %179 = vector.extract_strided_slice %174 {offsets = [0, 0], sizes = [14, 128], strides = [1, 1]} : vector<15x128xf32> to vector<14x128xf32>
    %180 = vector.extract_strided_slice %138 {offsets = [1, 0], sizes = [14, 128], strides = [1, 1]} : vector<15x128xf32> to vector<14x128xf32>
    %181 = vector.extract_strided_slice %147 {offsets = [1, 0], sizes = [14, 128], strides = [1, 1]} : vector<15x128xf32> to vector<14x128xf32>
    %182 = vector.extract_strided_slice %156 {offsets = [1, 0], sizes = [14, 128], strides = [1, 1]} : vector<15x128xf32> to vector<14x128xf32>
    %183 = vector.extract_strided_slice %165 {offsets = [1, 0], sizes = [14, 128], strides = [1, 1]} : vector<15x128xf32> to vector<14x128xf32>
    %184 = vector.extract_strided_slice %174 {offsets = [1, 0], sizes = [14, 128], strides = [1, 1]} : vector<15x128xf32> to vector<14x128xf32>
    %185 = vector.broadcast %15 : f32 to vector<14x128xf32>
    %186 = arith.mulf %185, %175 : vector<14x128xf32>
    %187 = vector.broadcast %16 : f32 to vector<14x128xf32>
    %188 = arith.mulf %187, %180 : vector<14x128xf32>
    %189 = arith.addf %186, %188 : vector<14x128xf32>
    %190 = vector.broadcast %17 : f32 to vector<14x128xf32>
    %191 = arith.mulf %190, %176 : vector<14x128xf32>
    %192 = arith.addf %189, %191 : vector<14x128xf32>
    %193 = vector.broadcast %18 : f32 to vector<14x128xf32>
    %194 = arith.mulf %193, %181 : vector<14x128xf32>
    %195 = arith.addf %192, %194 : vector<14x128xf32>
    %196 = vector.broadcast %19 : f32 to vector<14x128xf32>
    %197 = arith.mulf %196, %177 : vector<14x128xf32>
    %198 = arith.addf %195, %197 : vector<14x128xf32>
    %199 = vector.broadcast %20 : f32 to vector<14x128xf32>
    %200 = arith.mulf %199, %182 : vector<14x128xf32>
    %201 = arith.addf %198, %200 : vector<14x128xf32>
    %202 = vector.broadcast %21 : f32 to vector<14x128xf32>
    %203 = arith.mulf %202, %178 : vector<14x128xf32>
    %204 = arith.addf %201, %203 : vector<14x128xf32>
    %205 = vector.broadcast %22 : f32 to vector<14x128xf32>
    %206 = arith.mulf %205, %183 : vector<14x128xf32>
    %207 = arith.addf %204, %206 : vector<14x128xf32>
    %208 = vector.broadcast %23 : f32 to vector<14x128xf32>
    %209 = arith.mulf %208, %179 : vector<14x128xf32>
    %210 = arith.addf %207, %209 : vector<14x128xf32>
    %211 = vector.broadcast %24 : f32 to vector<14x128xf32>
    %212 = arith.mulf %211, %184 : vector<14x128xf32>
    %213 = arith.addf %210, %212 : vector<14x128xf32>
    %214 = vector.broadcast %115 : f32 to vector<14x128xf32>
    %215 = arith.addf %213, %214 : vector<14x128xf32>
    %cst_6 = arith.constant 0.000000e+00 : f32
    %216 = vector.broadcast %cst_6 : f32 to vector<14x128xf32>
    %217 = arith.maximumf %215, %216 : vector<14x128xf32>
    %c0_7 = arith.constant 0 : index
    %c0_8 = arith.constant 0 : index
    %218 = vector.load %arg4[%c0_7, %c0_8] : memref<144x128xf32, #tpu.memory_space<vmem>>, vector<14x128xf32>
    tpu.vector_store %arg4[%c0_7, %c0_8], %217 {strides = array<i32>} : memref<144x128xf32, #tpu.memory_space<vmem>>, vector<14x128xf32>,
    %219 = vector.broadcast %25 : f32 to vector<14x128xf32>
    %220 = arith.mulf %219, %175 : vector<14x128xf32>
    %221 = vector.broadcast %26 : f32 to vector<14x128xf32>
    %222 = arith.mulf %221, %180 : vector<14x128xf32>
    %223 = arith.addf %220, %222 : vector<14x128xf32>
    %224 = vector.broadcast %27 : f32 to vector<14x128xf32>
    %225 = arith.mulf %224, %176 : vector<14x128xf32>
    %226 = arith.addf %223, %225 : vector<14x128xf32>
    %227 = vector.broadcast %28 : f32 to vector<14x128xf32>
    %228 = arith.mulf %227, %181 : vector<14x128xf32>
    %229 = arith.addf %226, %228 : vector<14x128xf32>
    %230 = vector.broadcast %29 : f32 to vector<14x128xf32>
    %231 = arith.mulf %230, %177 : vector<14x128xf32>
    %232 = arith.addf %229, %231 : vector<14x128xf32>
    %233 = vector.broadcast %30 : f32 to vector<14x128xf32>
    %234 = arith.mulf %233, %182 : vector<14x128xf32>
    %235 = arith.addf %232, %234 : vector<14x128xf32>
    %236 = vector.broadcast %31 : f32 to vector<14x128xf32>
    %237 = arith.mulf %236, %178 : vector<14x128xf32>
    %238 = arith.addf %235, %237 : vector<14x128xf32>
    %239 = vector.broadcast %32 : f32 to vector<14x128xf32>
    %240 = arith.mulf %239, %183 : vector<14x128xf32>
    %241 = arith.addf %238, %240 : vector<14x128xf32>
    %242 = vector.broadcast %33 : f32 to vector<14x128xf32>
    %243 = arith.mulf %242, %179 : vector<14x128xf32>
    %244 = arith.addf %241, %243 : vector<14x128xf32>
    %245 = vector.broadcast %34 : f32 to vector<14x128xf32>
    %246 = arith.mulf %245, %184 : vector<14x128xf32>
    %247 = arith.addf %244, %246 : vector<14x128xf32>
    %248 = vector.broadcast %116 : f32 to vector<14x128xf32>
    %249 = arith.addf %247, %248 : vector<14x128xf32>
    %cst_9 = arith.constant 0.000000e+00 : f32
    %250 = vector.broadcast %cst_9 : f32 to vector<14x128xf32>
    %251 = arith.maximumf %249, %250 : vector<14x128xf32>
    %c14_10 = arith.constant 14 : index
    %c0_11 = arith.constant 0 : index
    %252 = vector.load %arg4[%c14_10, %c0_11] : memref<144x128xf32, #tpu.memory_space<vmem>>, vector<14x128xf32>
    tpu.vector_store %arg4[%c14_10, %c0_11], %251 {strides = array<i32>} : memref<144x128xf32, #tpu.memory_space<vmem>>, vector<14x128xf32>,
    %253 = vector.broadcast %35 : f32 to vector<14x128xf32>
    %254 = arith.mulf %253, %175 : vector<14x128xf32>
    %255 = vector.broadcast %36 : f32 to vector<14x128xf32>
    %256 = arith.mulf %255, %180 : vector<14x128xf32>
    %257 = arith.addf %254, %256 : vector<14x128xf32>
    %258 = vector.broadcast %37 : f32 to vector<14x128xf32>
    %259 = arith.mulf %258, %176 : vector<14x128xf32>
    %260 = arith.addf %257, %259 : vector<14x128xf32>
    %261 = vector.broadcast %38 : f32 to vector<14x128xf32>
    %262 = arith.mulf %261, %181 : vector<14x128xf32>
    %263 = arith.addf %260, %262 : vector<14x128xf32>
    %264 = vector.broadcast %39 : f32 to vector<14x128xf32>
    %265 = arith.mulf %264, %177 : vector<14x128xf32>
    %266 = arith.addf %263, %265 : vector<14x128xf32>
    %267 = vector.broadcast %40 : f32 to vector<14x128xf32>
    %268 = arith.mulf %267, %182 : vector<14x128xf32>
    %269 = arith.addf %266, %268 : vector<14x128xf32>
    %270 = vector.broadcast %41 : f32 to vector<14x128xf32>
    %271 = arith.mulf %270, %178 : vector<14x128xf32>
    %272 = arith.addf %269, %271 : vector<14x128xf32>
    %273 = vector.broadcast %42 : f32 to vector<14x128xf32>
    %274 = arith.mulf %273, %183 : vector<14x128xf32>
    %275 = arith.addf %272, %274 : vector<14x128xf32>
    %276 = vector.broadcast %43 : f32 to vector<14x128xf32>
    %277 = arith.mulf %276, %179 : vector<14x128xf32>
    %278 = arith.addf %275, %277 : vector<14x128xf32>
    %279 = vector.broadcast %44 : f32 to vector<14x128xf32>
    %280 = arith.mulf %279, %184 : vector<14x128xf32>
    %281 = arith.addf %278, %280 : vector<14x128xf32>
    %282 = vector.broadcast %117 : f32 to vector<14x128xf32>
    %283 = arith.addf %281, %282 : vector<14x128xf32>
    %cst_12 = arith.constant 0.000000e+00 : f32
    %284 = vector.broadcast %cst_12 : f32 to vector<14x128xf32>
    %285 = arith.maximumf %283, %284 : vector<14x128xf32>
    %c28_13 = arith.constant 28 : index
    %c0_14 = arith.constant 0 : index
    %286 = vector.load %arg4[%c28_13, %c0_14] : memref<144x128xf32, #tpu.memory_space<vmem>>, vector<14x128xf32>
    tpu.vector_store %arg4[%c28_13, %c0_14], %285 {strides = array<i32>} : memref<144x128xf32, #tpu.memory_space<vmem>>, vector<14x128xf32>,
    %287 = vector.broadcast %45 : f32 to vector<14x128xf32>
    %288 = arith.mulf %287, %175 : vector<14x128xf32>
    %289 = vector.broadcast %46 : f32 to vector<14x128xf32>
    %290 = arith.mulf %289, %180 : vector<14x128xf32>
    %291 = arith.addf %288, %290 : vector<14x128xf32>
    %292 = vector.broadcast %47 : f32 to vector<14x128xf32>
    %293 = arith.mulf %292, %176 : vector<14x128xf32>
    %294 = arith.addf %291, %293 : vector<14x128xf32>
    %295 = vector.broadcast %48 : f32 to vector<14x128xf32>
    %296 = arith.mulf %295, %181 : vector<14x128xf32>
    %297 = arith.addf %294, %296 : vector<14x128xf32>
    %298 = vector.broadcast %49 : f32 to vector<14x128xf32>
    %299 = arith.mulf %298, %177 : vector<14x128xf32>
    %300 = arith.addf %297, %299 : vector<14x128xf32>
    %301 = vector.broadcast %50 : f32 to vector<14x128xf32>
    %302 = arith.mulf %301, %182 : vector<14x128xf32>
    %303 = arith.addf %300, %302 : vector<14x128xf32>
    %304 = vector.broadcast %51 : f32 to vector<14x128xf32>
    %305 = arith.mulf %304, %178 : vector<14x128xf32>
    %306 = arith.addf %303, %305 : vector<14x128xf32>
    %307 = vector.broadcast %52 : f32 to vector<14x128xf32>
    %308 = arith.mulf %307, %183 : vector<14x128xf32>
    %309 = arith.addf %306, %308 : vector<14x128xf32>
    %310 = vector.broadcast %53 : f32 to vector<14x128xf32>
    %311 = arith.mulf %310, %179 : vector<14x128xf32>
    %312 = arith.addf %309, %311 : vector<14x128xf32>
    %313 = vector.broadcast %54 : f32 to vector<14x128xf32>
    %314 = arith.mulf %313, %184 : vector<14x128xf32>
    %315 = arith.addf %312, %314 : vector<14x128xf32>
    %316 = vector.broadcast %118 : f32 to vector<14x128xf32>
    %317 = arith.addf %315, %316 : vector<14x128xf32>
    %cst_15 = arith.constant 0.000000e+00 : f32
    %318 = vector.broadcast %cst_15 : f32 to vector<14x128xf32>
    %319 = arith.maximumf %317, %318 : vector<14x128xf32>
    %c42_16 = arith.constant 42 : index
    %c0_17 = arith.constant 0 : index
    %320 = vector.load %arg4[%c42_16, %c0_17] : memref<144x128xf32, #tpu.memory_space<vmem>>, vector<14x128xf32>
    tpu.vector_store %arg4[%c42_16, %c0_17], %319 {strides = array<i32>} : memref<144x128xf32, #tpu.memory_space<vmem>>, vector<14x128xf32>,
    %321 = vector.broadcast %55 : f32 to vector<14x128xf32>
    %322 = arith.mulf %321, %175 : vector<14x128xf32>
    %323 = vector.broadcast %56 : f32 to vector<14x128xf32>
    %324 = arith.mulf %323, %180 : vector<14x128xf32>
    %325 = arith.addf %322, %324 : vector<14x128xf32>
    %326 = vector.broadcast %57 : f32 to vector<14x128xf32>
    %327 = arith.mulf %326, %176 : vector<14x128xf32>
    %328 = arith.addf %325, %327 : vector<14x128xf32>
    %329 = vector.broadcast %58 : f32 to vector<14x128xf32>
    %330 = arith.mulf %329, %181 : vector<14x128xf32>
    %331 = arith.addf %328, %330 : vector<14x128xf32>
    %332 = vector.broadcast %59 : f32 to vector<14x128xf32>
    %333 = arith.mulf %332, %177 : vector<14x128xf32>
    %334 = arith.addf %331, %333 : vector<14x128xf32>
    %335 = vector.broadcast %60 : f32 to vector<14x128xf32>
    %336 = arith.mulf %335, %182 : vector<14x128xf32>
    %337 = arith.addf %334, %336 : vector<14x128xf32>
    %338 = vector.broadcast %61 : f32 to vector<14x128xf32>
    %339 = arith.mulf %338, %178 : vector<14x128xf32>
    %340 = arith.addf %337, %339 : vector<14x128xf32>
    %341 = vector.broadcast %62 : f32 to vector<14x128xf32>
    %342 = arith.mulf %341, %183 : vector<14x128xf32>
    %343 = arith.addf %340, %342 : vector<14x128xf32>
    %344 = vector.broadcast %63 : f32 to vector<14x128xf32>
    %345 = arith.mulf %344, %179 : vector<14x128xf32>
    %346 = arith.addf %343, %345 : vector<14x128xf32>
    %347 = vector.broadcast %64 : f32 to vector<14x128xf32>
    %348 = arith.mulf %347, %184 : vector<14x128xf32>
    %349 = arith.addf %346, %348 : vector<14x128xf32>
    %350 = vector.broadcast %119 : f32 to vector<14x128xf32>
    %351 = arith.addf %349, %350 : vector<14x128xf32>
    %cst_18 = arith.constant 0.000000e+00 : f32
    %352 = vector.broadcast %cst_18 : f32 to vector<14x128xf32>
    %353 = arith.maximumf %351, %352 : vector<14x128xf32>
    %c56_19 = arith.constant 56 : index
    %c0_20 = arith.constant 0 : index
    %354 = vector.load %arg4[%c56_19, %c0_20] : memref<144x128xf32, #tpu.memory_space<vmem>>, vector<14x128xf32>
    tpu.vector_store %arg4[%c56_19, %c0_20], %353 {strides = array<i32>} : memref<144x128xf32, #tpu.memory_space<vmem>>, vector<14x128xf32>,
    %355 = vector.broadcast %65 : f32 to vector<14x128xf32>
    %356 = arith.mulf %355, %175 : vector<14x128xf32>
    %357 = vector.broadcast %66 : f32 to vector<14x128xf32>
    %358 = arith.mulf %357, %180 : vector<14x128xf32>
    %359 = arith.addf %356, %358 : vector<14x128xf32>
    %360 = vector.broadcast %67 : f32 to vector<14x128xf32>
    %361 = arith.mulf %360, %176 : vector<14x128xf32>
    %362 = arith.addf %359, %361 : vector<14x128xf32>
    %363 = vector.broadcast %68 : f32 to vector<14x128xf32>
    %364 = arith.mulf %363, %181 : vector<14x128xf32>
    %365 = arith.addf %362, %364 : vector<14x128xf32>
    %366 = vector.broadcast %69 : f32 to vector<14x128xf32>
    %367 = arith.mulf %366, %177 : vector<14x128xf32>
    %368 = arith.addf %365, %367 : vector<14x128xf32>
    %369 = vector.broadcast %70 : f32 to vector<14x128xf32>
    %370 = arith.mulf %369, %182 : vector<14x128xf32>
    %371 = arith.addf %368, %370 : vector<14x128xf32>
    %372 = vector.broadcast %71 : f32 to vector<14x128xf32>
    %373 = arith.mulf %372, %178 : vector<14x128xf32>
    %374 = arith.addf %371, %373 : vector<14x128xf32>
    %375 = vector.broadcast %72 : f32 to vector<14x128xf32>
    %376 = arith.mulf %375, %183 : vector<14x128xf32>
    %377 = arith.addf %374, %376 : vector<14x128xf32>
    %378 = vector.broadcast %73 : f32 to vector<14x128xf32>
    %379 = arith.mulf %378, %179 : vector<14x128xf32>
    %380 = arith.addf %377, %379 : vector<14x128xf32>
    %381 = vector.broadcast %74 : f32 to vector<14x128xf32>
    %382 = arith.mulf %381, %184 : vector<14x128xf32>
    %383 = arith.addf %380, %382 : vector<14x128xf32>
    %384 = vector.broadcast %120 : f32 to vector<14x128xf32>
    %385 = arith.addf %383, %384 : vector<14x128xf32>
    %cst_21 = arith.constant 0.000000e+00 : f32
    %386 = vector.broadcast %cst_21 : f32 to vector<14x128xf32>
    %387 = arith.maximumf %385, %386 : vector<14x128xf32>
    %c70_22 = arith.constant 70 : index
    %c0_23 = arith.constant 0 : index
    %388 = vector.load %arg4[%c70_22, %c0_23] : memref<144x128xf32, #tpu.memory_space<vmem>>, vector<14x128xf32>
    tpu.vector_store %arg4[%c70_22, %c0_23], %387 {strides = array<i32>} : memref<144x128xf32, #tpu.memory_space<vmem>>, vector<14x128xf32>,
    %389 = vector.broadcast %75 : f32 to vector<14x128xf32>
    %390 = arith.mulf %389, %175 : vector<14x128xf32>
    %391 = vector.broadcast %76 : f32 to vector<14x128xf32>
    %392 = arith.mulf %391, %180 : vector<14x128xf32>
    %393 = arith.addf %390, %392 : vector<14x128xf32>
    %394 = vector.broadcast %77 : f32 to vector<14x128xf32>
    %395 = arith.mulf %394, %176 : vector<14x128xf32>
    %396 = arith.addf %393, %395 : vector<14x128xf32>
    %397 = vector.broadcast %78 : f32 to vector<14x128xf32>
    %398 = arith.mulf %397, %181 : vector<14x128xf32>
    %399 = arith.addf %396, %398 : vector<14x128xf32>
    %400 = vector.broadcast %79 : f32 to vector<14x128xf32>
    %401 = arith.mulf %400, %177 : vector<14x128xf32>
    %402 = arith.addf %399, %401 : vector<14x128xf32>
    %403 = vector.broadcast %80 : f32 to vector<14x128xf32>
    %404 = arith.mulf %403, %182 : vector<14x128xf32>
    %405 = arith.addf %402, %404 : vector<14x128xf32>
    %406 = vector.broadcast %81 : f32 to vector<14x128xf32>
    %407 = arith.mulf %406, %178 : vector<14x128xf32>
    %408 = arith.addf %405, %407 : vector<14x128xf32>
    %409 = vector.broadcast %82 : f32 to vector<14x128xf32>
    %410 = arith.mulf %409, %183 : vector<14x128xf32>
    %411 = arith.addf %408, %410 : vector<14x128xf32>
    %412 = vector.broadcast %83 : f32 to vector<14x128xf32>
    %413 = arith.mulf %412, %179 : vector<14x128xf32>
    %414 = arith.addf %411, %413 : vector<14x128xf32>
    %415 = vector.broadcast %84 : f32 to vector<14x128xf32>
    %416 = arith.mulf %415, %184 : vector<14x128xf32>
    %417 = arith.addf %414, %416 : vector<14x128xf32>
    %418 = vector.broadcast %121 : f32 to vector<14x128xf32>
    %419 = arith.addf %417, %418 : vector<14x128xf32>
    %cst_24 = arith.constant 0.000000e+00 : f32
    %420 = vector.broadcast %cst_24 : f32 to vector<14x128xf32>
    %421 = arith.maximumf %419, %420 : vector<14x128xf32>
    %c84_25 = arith.constant 84 : index
    %c0_26 = arith.constant 0 : index
    %422 = vector.load %arg4[%c84_25, %c0_26] : memref<144x128xf32, #tpu.memory_space<vmem>>, vector<14x128xf32>
    tpu.vector_store %arg4[%c84_25, %c0_26], %421 {strides = array<i32>} : memref<144x128xf32, #tpu.memory_space<vmem>>, vector<14x128xf32>,
    %423 = vector.broadcast %85 : f32 to vector<14x128xf32>
    %424 = arith.mulf %423, %175 : vector<14x128xf32>
    %425 = vector.broadcast %86 : f32 to vector<14x128xf32>
    %426 = arith.mulf %425, %180 : vector<14x128xf32>
    %427 = arith.addf %424, %426 : vector<14x128xf32>
    %428 = vector.broadcast %87 : f32 to vector<14x128xf32>
    %429 = arith.mulf %428, %176 : vector<14x128xf32>
    %430 = arith.addf %427, %429 : vector<14x128xf32>
    %431 = vector.broadcast %88 : f32 to vector<14x128xf32>
    %432 = arith.mulf %431, %181 : vector<14x128xf32>
    %433 = arith.addf %430, %432 : vector<14x128xf32>
    %434 = vector.broadcast %89 : f32 to vector<14x128xf32>
    %435 = arith.mulf %434, %177 : vector<14x128xf32>
    %436 = arith.addf %433, %435 : vector<14x128xf32>
    %437 = vector.broadcast %90 : f32 to vector<14x128xf32>
    %438 = arith.mulf %437, %182 : vector<14x128xf32>
    %439 = arith.addf %436, %438 : vector<14x128xf32>
    %440 = vector.broadcast %91 : f32 to vector<14x128xf32>
    %441 = arith.mulf %440, %178 : vector<14x128xf32>
    %442 = arith.addf %439, %441 : vector<14x128xf32>
    %443 = vector.broadcast %92 : f32 to vector<14x128xf32>
    %444 = arith.mulf %443, %183 : vector<14x128xf32>
    %445 = arith.addf %442, %444 : vector<14x128xf32>
    %446 = vector.broadcast %93 : f32 to vector<14x128xf32>
    %447 = arith.mulf %446, %179 : vector<14x128xf32>
    %448 = arith.addf %445, %447 : vector<14x128xf32>
    %449 = vector.broadcast %94 : f32 to vector<14x128xf32>
    %450 = arith.mulf %449, %184 : vector<14x128xf32>
    %451 = arith.addf %448, %450 : vector<14x128xf32>
    %452 = vector.broadcast %122 : f32 to vector<14x128xf32>
    %453 = arith.addf %451, %452 : vector<14x128xf32>
    %cst_27 = arith.constant 0.000000e+00 : f32
    %454 = vector.broadcast %cst_27 : f32 to vector<14x128xf32>
    %455 = arith.maximumf %453, %454 : vector<14x128xf32>
    %c98_28 = arith.constant 98 : index
    %c0_29 = arith.constant 0 : index
    %456 = vector.load %arg4[%c98_28, %c0_29] : memref<144x128xf32, #tpu.memory_space<vmem>>, vector<14x128xf32>
    tpu.vector_store %arg4[%c98_28, %c0_29], %455 {strides = array<i32>} : memref<144x128xf32, #tpu.memory_space<vmem>>, vector<14x128xf32>,
    %457 = vector.broadcast %95 : f32 to vector<14x128xf32>
    %458 = arith.mulf %457, %175 : vector<14x128xf32>
    %459 = vector.broadcast %96 : f32 to vector<14x128xf32>
    %460 = arith.mulf %459, %180 : vector<14x128xf32>
    %461 = arith.addf %458, %460 : vector<14x128xf32>
    %462 = vector.broadcast %97 : f32 to vector<14x128xf32>
    %463 = arith.mulf %462, %176 : vector<14x128xf32>
    %464 = arith.addf %461, %463 : vector<14x128xf32>
    %465 = vector.broadcast %98 : f32 to vector<14x128xf32>
    %466 = arith.mulf %465, %181 : vector<14x128xf32>
    %467 = arith.addf %464, %466 : vector<14x128xf32>
    %468 = vector.broadcast %99 : f32 to vector<14x128xf32>
    %469 = arith.mulf %468, %177 : vector<14x128xf32>
    %470 = arith.addf %467, %469 : vector<14x128xf32>
    %471 = vector.broadcast %100 : f32 to vector<14x128xf32>
    %472 = arith.mulf %471, %182 : vector<14x128xf32>
    %473 = arith.addf %470, %472 : vector<14x128xf32>
    %474 = vector.broadcast %101 : f32 to vector<14x128xf32>
    %475 = arith.mulf %474, %178 : vector<14x128xf32>
    %476 = arith.addf %473, %475 : vector<14x128xf32>
    %477 = vector.broadcast %102 : f32 to vector<14x128xf32>
    %478 = arith.mulf %477, %183 : vector<14x128xf32>
    %479 = arith.addf %476, %478 : vector<14x128xf32>
    %480 = vector.broadcast %103 : f32 to vector<14x128xf32>
    %481 = arith.mulf %480, %179 : vector<14x128xf32>
    %482 = arith.addf %479, %481 : vector<14x128xf32>
    %483 = vector.broadcast %104 : f32 to vector<14x128xf32>
    %484 = arith.mulf %483, %184 : vector<14x128xf32>
    %485 = arith.addf %482, %484 : vector<14x128xf32>
    %486 = vector.broadcast %123 : f32 to vector<14x128xf32>
    %487 = arith.addf %485, %486 : vector<14x128xf32>
    %cst_30 = arith.constant 0.000000e+00 : f32
    %488 = vector.broadcast %cst_30 : f32 to vector<14x128xf32>
    %489 = arith.maximumf %487, %488 : vector<14x128xf32>
    %c112_31 = arith.constant 112 : index
    %c0_32 = arith.constant 0 : index
    %490 = vector.load %arg4[%c112_31, %c0_32] : memref<144x128xf32, #tpu.memory_space<vmem>>, vector<14x128xf32>
    tpu.vector_store %arg4[%c112_31, %c0_32], %489 {strides = array<i32>} : memref<144x128xf32, #tpu.memory_space<vmem>>, vector<14x128xf32>,
    %491 = vector.broadcast %105 : f32 to vector<14x128xf32>
    %492 = arith.mulf %491, %175 : vector<14x128xf32>
    %493 = vector.broadcast %106 : f32 to vector<14x128xf32>
    %494 = arith.mulf %493, %180 : vector<14x128xf32>
    %495 = arith.addf %492, %494 : vector<14x128xf32>
    %496 = vector.broadcast %107 : f32 to vector<14x128xf32>
    %497 = arith.mulf %496, %176 : vector<14x128xf32>
    %498 = arith.addf %495, %497 : vector<14x128xf32>
    %499 = vector.broadcast %108 : f32 to vector<14x128xf32>
    %500 = arith.mulf %499, %181 : vector<14x128xf32>
    %501 = arith.addf %498, %500 : vector<14x128xf32>
    %502 = vector.broadcast %109 : f32 to vector<14x128xf32>
    %503 = arith.mulf %502, %177 : vector<14x128xf32>
    %504 = arith.addf %501, %503 : vector<14x128xf32>
    %505 = vector.broadcast %110 : f32 to vector<14x128xf32>
    %506 = arith.mulf %505, %182 : vector<14x128xf32>
    %507 = arith.addf %504, %506 : vector<14x128xf32>
    %508 = vector.broadcast %111 : f32 to vector<14x128xf32>
    %509 = arith.mulf %508, %178 : vector<14x128xf32>
    %510 = arith.addf %507, %509 : vector<14x128xf32>
    %511 = vector.broadcast %112 : f32 to vector<14x128xf32>
    %512 = arith.mulf %511, %183 : vector<14x128xf32>
    %513 = arith.addf %510, %512 : vector<14x128xf32>
    %514 = vector.broadcast %113 : f32 to vector<14x128xf32>
    %515 = arith.mulf %514, %179 : vector<14x128xf32>
    %516 = arith.addf %513, %515 : vector<14x128xf32>
    %517 = vector.broadcast %114 : f32 to vector<14x128xf32>
    %518 = arith.mulf %517, %184 : vector<14x128xf32>
    %519 = arith.addf %516, %518 : vector<14x128xf32>
    %520 = vector.broadcast %124 : f32 to vector<14x128xf32>
    %521 = arith.addf %519, %520 : vector<14x128xf32>
    %cst_33 = arith.constant 0.000000e+00 : f32
    %522 = vector.broadcast %cst_33 : f32 to vector<14x128xf32>
    %523 = arith.maximumf %521, %522 : vector<14x128xf32>
    %c126 = arith.constant 126 : index
    %c0_34 = arith.constant 0 : index
    %524 = vector.load %arg4[%c126, %c0_34] : memref<144x128xf32, #tpu.memory_space<vmem>>, vector<14x128xf32>
    tpu.vector_store %arg4[%c126, %c0_34], %523 {strides = array<i32>} : memref<144x128xf32, #tpu.memory_space<vmem>>, vector<14x128xf32>,
    %c0_35 = arith.constant 0 : index
    %c0_36 = arith.constant 0 : index
    %525 = vector.load %arg4[%c0_35, %c0_36] : memref<144x128xf32, #tpu.memory_space<vmem>>, vector<128x128xf32>
    %526 = tpu.transpose %525, [1, 0] : vector<128x128xf32> -> vector<128x128xf32>
    %527 = arith.index_cast %c0_i32 : i32 to index
    %c0_37 = arith.constant 0 : index
    %c0_38 = arith.constant 0 : index
    %528 = vector.load %arg3[%527, %c0_37, %c0_38] : memref<1x128x140xf32, #tpu.memory_space<vmem>>, vector<1x128x128xf32>
    %529 = vector.shape_cast %528 : vector<1x128x128xf32> to vector<128x128xf32>
    %530 = vector.shape_cast %526 : vector<128x128xf32> to vector<1x128x128xf32>
    tpu.vector_store %arg3[%527, %c0_37, %c0_38], %530 {strides = array<i32>} : memref<1x128x140xf32, #tpu.memory_space<vmem>>, vector<1x128x128xf32>,
    %c128 = arith.constant 128 : index
    %c0_39 = arith.constant 0 : index
    %531 = vector.load %arg4[%c128, %c0_39] : memref<144x128xf32, #tpu.memory_space<vmem>>, vector<16x128xf32>
    %532 = tpu.transpose %531, [1, 0] : vector<16x128xf32> -> vector<128x16xf32>
    %533 = vector.extract_strided_slice %532 {offsets = [0, 0], sizes = [128, 12], strides = [1, 1]} : vector<128x16xf32> to vector<128x12xf32>
    %534 = arith.index_cast %c0_i32 : i32 to index
    %c0_40 = arith.constant 0 : index
    %c128_41 = arith.constant 128 : index
    %535 = vector.load %arg3[%534, %c0_40, %c128_41] : memref<1x128x140xf32, #tpu.memory_space<vmem>>, vector<1x128x12xf32>
    %536 = vector.shape_cast %535 : vector<1x128x12xf32> to vector<128x12xf32>
    %537 = vector.shape_cast %533 : vector<128x12xf32> to vector<1x128x12xf32>
    tpu.vector_store %arg3[%534, %c0_40, %c128_41], %537 {strides = array<i32>} : memref<1x128x140xf32, #tpu.memory_space<vmem>>, vector<1x128x12xf32>,
    %c1_i32 = arith.constant 1 : i32
    return
  }
  func.func @transform_0(%arg0: i32) -> i32 {
    %c0_i32 = arith.constant 0 : i32
    %c0_i32_0 = arith.constant 0 : i32
    return %c0_i32 : i32
  }
  func.func @transform_1(%arg0: i32) -> (i32, i32, i32) {
    %c0_i32 = arith.constant 0 : i32
    %c0_i32_0 = arith.constant 0 : i32
    %c0_i32_1 = arith.constant 0 : i32
    return %arg0, %c0_i32, %c0_i32_0 : i32, i32, i32
  }
  func.func @transform_2(%arg0: i32) -> (i32, i32, i32) {
    %c0_i32 = arith.constant 0 : i32
    %c0_i32_0 = arith.constant 0 : i32
    %c0_i32_1 = arith.constant 0 : i32
    return %arg0, %c0_i32, %c0_i32_0 : i32, i32, i32
  }
}

</mosaic_0001>

<llo_original>
// kernel: conv_dueling_forward.1
$region0: #{conv_dueling_forward.1}
  #allocation0 [shape = 'u32[]', space=smem, size = 0x4, offset = 0x4, fixed_abs, tag = 'smem constant byte address 0x4 - core index']
  #allocation1 [shape = 'u32[144,128]{1,0:T(1,128)}', space=vmem, size = 0x12000, scoped, tag = 'internal scratch']
  #allocation2 [shape = 'f32[144,128]{1,0:T(8,128)}', space=vmem, size = 0x12000, scoped, tag = 'scratch operand']
  %s0 = inlined_call_operand.vmem [shape: f32[125], index: 0, kind: input, shape index: {}]
  %s1 = inlined_call_operand.vmem [shape: f32[1,16,128], index: 1, kind: input, shape index: {}]
  %s2 = inlined_call_operand.vmem [shape: f32[1,128,140], index: 2, kind: output, shape index: {}]
  %s3 = sld [smem:[#allocation0]]
  $region22: #{conv_dueling_forward.1} parent=0
    _
  %s5 = ssub.s32 1, %s3
  %s6 = scalar_select 0, %s5, %s3
  $region1: #{conv_dueling_forward.1} parent=0
    #allocation3 [shape = 'u8[512]{0}', space=smem, size = 0x200, scoped, tag = 'input window, operand 0, single buffered']
    #allocation4 [shape = 's32[1]{0}', space=sflag, size = 0x4, scoped, tag = 'scoped memory for conv_dueling_forward.1']
    %7 = vsyncpa [#allocation4], 0
    // Predicated region
    $region2: #{conv_dueling_forward.1} parent=1 // pred_check
      _
    $region3: #{conv_dueling_forward.1} parent=1 // pred_check_branch
      %9 = sbr.rel (0) target = $region5
    $region4: #{conv_dueling_forward.1} parent=1 // pred_region
      %s11 = ssub.s32 16, 16
      %12 = vsyncadd [#allocation4], %s11
      %s14 = sshll.u32 %s0, 4
      %s15 = int_to_ptr.vmem [resolvable:$true] %s14
      %17 = dma.vmem_to_smem %s15, 16, [#allocation3], [#allocation4]
    $region5: #{conv_dueling_forward.1} parent=1 // pred_fallthru
      _
    // Predicated region
    $region6: #{conv_dueling_forward.1} parent=1 // pred_check
      _
    $region7: #{conv_dueling_forward.1} parent=1 // pred_check_branch
      %19 = sbr.rel (0) target = $region9
    $region8: #{conv_dueling_forward.1} parent=1 // pred_region
      _
    $region9: #{conv_dueling_forward.1} parent=1 // pred_fallthru
      _
    // Predicated region
    $region10: #{conv_dueling_forward.1} parent=1 // pred_check
      _
    $region11: #{conv_dueling_forward.1} parent=1 // pred_check_branch
      %21 = sbr.rel (0) target = $region13
    $region12: #{conv_dueling_forward.1} parent=1 // pred_region
      %22 = dma.done [#allocation4], 16
    $region13: #{conv_dueling_forward.1} parent=1 // pred_fallthru
      _
    %23 = sfence
    %s24 = sld [smem:[#allocation3]]
    %s25 = sld [smem:[#allocation3 + $0x1]]
    %s26 = sld [smem:[#allocation3 + $0x2]]
    %s27 = sld [smem:[#allocation3 + $0x3]]
    %s28 = sld [smem:[#allocation3 + $0x4]]
    %s29 = sld [smem:[#allocation3 + $0x5]]
    %s30 = sld [smem:[#allocation3 + $0x6]]
    %s31 = sld [smem:[#allocation3 + $0x7]]
    %s32 = sld [smem:[#allocation3 + $0x8]]
    %s33 = sld [smem:[#allocation3 + $0x9]]
    %s34 = sld [smem:[#allocation3 + $0xa]]
    %s35 = sld [smem:[#allocation3 + $0xb]]
    %s36 = sld [smem:[#allocation3 + $0xc]]
    %s37 = sld [smem:[#allocation3 + $0xd]]
    %s38 = sld [smem:[#allocation3 + $0xe]]
    %s39 = sld [smem:[#allocation3 + $0xf]]
    %s40 = sld [smem:[#allocation3 + $0x10]]
    %s41 = sld [smem:[#allocation3 + $0x11]]
    %s42 = sld [smem:[#allocation3 + $0x12]]
    %s43 = sld [smem:[#allocation3 + $0x13]]
    %s44 = sld [smem:[#allocation3 + $0x14]]
    %s45 = sld [smem:[#allocation3 + $0x15]]
    %s46 = sld [smem:[#allocation3 + $0x16]]
    %s47 = sld [smem:[#allocation3 + $0x17]]
    %s48 = sld [smem:[#allocation3 + $0x18]]
    %s49 = sld [smem:[#allocation3 + $0x19]]
    %s50 = sld [smem:[#allocation3 + $0x1a]]
    %s51 = sld [smem:[#allocation3 + $0x1b]]
    %s52 = sld [smem:[#allocation3 + $0x1c]]
    %s53 = sld [smem:[#allocation3 + $0x1d]]
    %s54 = sld [smem:[#allocation3 + $0x1e]]
    %s55 = sld [smem:[#allocation3 + $0x1f]]
    %s56 = sld [smem:[#allocation3 + $0x20]]
    %s57 = sld [smem:[#allocation3 + $0x21]]
    %s58 = sld [smem:[#allocation3 + $0x22]]
    %s59 = sld [smem:[#allocation3 + $0x23]]
    %s60 = sld [smem:[#allocation3 + $0x24]]
    %s61 = sld [smem:[#allocation3 + $0x25]]
    %s62 = sld [smem:[#allocation3 + $0x26]]
    %s63 = sld [smem:[#allocation3 + $0x27]]
    %s64 = sld [smem:[#allocation3 + $0x28]]
    %s65 = sld [smem:[#allocation3 + $0x29]]
    %s66 = sld [smem:[#allocation3 + $0x2a]]
    %s67 = sld [smem:[#allocation3 + $0x2b]]
    %s68 = sld [smem:[#allocation3 + $0x2c]]
    %s69 = sld [smem:[#allocation3 + $0x2d]]
    %s70 = sld [smem:[#allocation3 + $0x2e]]
    %s71 = sld [smem:[#allocation3 + $0x2f]]
    %s72 = sld [smem:[#allocation3 + $0x30]]
    %s73 = sld [smem:[#allocation3 + $0x31]]
    %s74 = sld [smem:[#allocation3 + $0x32]]
    %s75 = sld [smem:[#allocation3 + $0x33]]
    %s76 = sld [smem:[#allocation3 + $0x34]]
    %s77 = sld [smem:[#allocation3 + $0x35]]
    %s78 = sld [smem:[#allocation3 + $0x36]]
    %s79 = sld [smem:[#allocation3 + $0x37]]
    %s80 = sld [smem:[#allocation3 + $0x38]]
    %s81 = sld [smem:[#allocation3 + $0x39]]
    %s82 = sld [smem:[#allocation3 + $0x3a]]
    %s83 = sld [smem:[#allocation3 + $0x3b]]
    %s84 = sld [smem:[#allocation3 + $0x3c]]
    %s85 = sld [smem:[#allocation3 + $0x3d]]
    %s86 = sld [smem:[#allocation3 + $0x3e]]
    %s87 = sld [smem:[#allocation3 + $0x3f]]
    %s88 = sld [smem:[#allocation3 + $0x40]]
    %s89 = sld [smem:[#allocation3 + $0x41]]
    %s90 = sld [smem:[#allocation3 + $0x42]]
    %s91 = sld [smem:[#allocation3 + $0x43]]
    %s92 = sld [smem:[#allocation3 + $0x44]]
    %s93 = sld [smem:[#allocation3 + $0x45]]
    %s94 = sld [smem:[#allocation3 + $0x46]]
    %s95 = sld [smem:[#allocation3 + $0x47]]
    %s96 = sld [smem:[#allocation3 + $0x48]]
    %s97 = sld [smem:[#allocation3 + $0x49]]
    %s98 = sld [smem:[#allocation3 + $0x4a]]
    %s99 = sld [smem:[#allocation3 + $0x4b]]
    %s100 = sld [smem:[#allocation3 + $0x4c]]
    %s101 = sld [smem:[#allocation3 + $0x4d]]
    %s102 = sld [smem:[#allocation3 + $0x4e]]
    %s103 = sld [smem:[#allocation3 + $0x4f]]
    %s104 = sld [smem:[#allocation3 + $0x50]]
    %s105 = sld [smem:[#allocation3 + $0x51]]
    %s106 = sld [smem:[#allocation3 + $0x52]]
    %s107 = sld [smem:[#allocation3 + $0x53]]
    %s108 = sld [smem:[#allocation3 + $0x54]]
    %s109 = sld [smem:[#allocation3 + $0x55]]
    %s110 = sld [smem:[#allocation3 + $0x56]]
    %s111 = sld [smem:[#allocation3 + $0x57]]
    %s112 = sld [smem:[#allocation3 + $0x58]]
    %s113 = sld [smem:[#allocation3 + $0x59]]
    %s114 = sld [smem:[#allocation3 + $0x5a]]
    %s115 = sld [smem:[#allocation3 + $0x5b]]
    %s116 = sld [smem:[#allocation3 + $0x5c]]
    %s117 = sld [smem:[#allocation3 + $0x5d]]
    %s118 = sld [smem:[#allocation3 + $0x5e]]
    %s119 = sld [smem:[#allocation3 + $0x5f]]
    %s120 = sld [smem:[#allocation3 + $0x60]]
    %s121 = sld [smem:[#allocation3 + $0x61]]
    %s122 = sld [smem:[#allocation3 + $0x62]]
    %s123 = sld [smem:[#allocation3 + $0x63]]
    %s124 = sld [smem:[#allocation3 + $0x64]]
    %s125 = sld [smem:[#allocation3 + $0x65]]
    %s126 = sld [smem:[#allocation3 + $0x66]]
    %s127 = sld [smem:[#allocation3 + $0x67]]
    %s128 = sld [smem:[#allocation3 + $0x68]]
    %s129 = sld [smem:[#allocation3 + $0x69]]
    %s130 = sld [smem:[#allocation3 + $0x6a]]
    %s131 = sld [smem:[#allocation3 + $0x6b]]
    %s132 = sld [smem:[#allocation3 + $0x6c]]
    %s133 = sld [smem:[#allocation3 + $0x6d]]
    %s134 = sld [smem:[#allocation3 + $0x6e]]
    %s135 = sld [smem:[#allocation3 + $0x6f]]
    %s136 = sld [smem:[#allocation3 + $0x70]]
    %s137 = sld [smem:[#allocation3 + $0x71]]
    %s138 = sld [smem:[#allocation3 + $0x72]]
    %s139 = sld [smem:[#allocation3 + $0x73]]
    %s140 = sld [smem:[#allocation3 + $0x74]]
    %s141 = sld [smem:[#allocation3 + $0x75]]
    %s142 = sld [smem:[#allocation3 + $0x76]]
    %s143 = sld [smem:[#allocation3 + $0x77]]
    %s144 = sld [smem:[#allocation3 + $0x78]]
    %s145 = sld [smem:[#allocation3 + $0x79]]
    %s146 = sld [smem:[#allocation3 + $0x7a]]
    %s147 = sld [smem:[#allocation3 + $0x7b]]
    %s148 = sld [smem:[#allocation3 + $0x7c]]
    %v149 = vld [vmem:[%s1] sm:$0xff]
    %v150 = vld [vmem:[%s1 + $0x8] sm:$0xff]
    %v151 = vstv %s24
    %v152 = vmul.f32 %v151, %v149
    %v153 = vmul.f32 %v151, %v150
    %v154 = vstv %s25
    %v155 = vmul.f32 %v154, %v149
    %v156 = vmul.f32 %v154, %v150
    %vm159 = vcmask 1046528
    %v160 = vrot.slane %v155, 1
    %v161 = vrot.slane %v156, 1
    %v162 = vsel %vm159, %v160, %v161
    %v165 = vadd.f32 %v152, %v162
    %v166 = vadd.f32 %v153, %v161
    %v167 = vstv %s34
    %v168 = vadd.f32 %v165, %v167
    %v169 = vadd.f32 %v166, %v167
    %v170 = vmax.f32 %v168, 0.0
    %v171 = vmax.f32 %v169, 0.0
    %v172 = vstv %s26
    %v173 = vmul.f32 %v172, %v149
    %v174 = vmul.f32 %v172, %v150
    %v175 = vstv %s27
    %v176 = vmul.f32 %v175, %v149
    %v177 = vmul.f32 %v175, %v150
    %v180 = vrot.slane %v176, 1
    %v181 = vrot.slane %v177, 1
    %v182 = vsel %vm159, %v180, %v181
    %v185 = vadd.f32 %v173, %v182
    %v186 = vadd.f32 %v174, %v181
    %v187 = vstv %s35
    %v188 = vadd.f32 %v185, %v187
    %v189 = vadd.f32 %v186, %v187
    %v190 = vmax.f32 %v188, 0.0
    %v191 = vmax.f32 %v189, 0.0
    %v192 = vstv %s28
    %v193 = vmul.f32 %v192, %v149
    %v194 = vmul.f32 %v192, %v150
    %v195 = vstv %s29
    %v196 = vmul.f32 %v195, %v149
    %v197 = vmul.f32 %v195, %v150
    %v200 = vrot.slane %v196, 1
    %v201 = vrot.slane %v197, 1
    %v202 = vsel %vm159, %v200, %v201
    %v205 = vadd.f32 %v193, %v202
    %v206 = vadd.f32 %v194, %v201
    %v207 = vstv %s36
    %v208 = vadd.f32 %v205, %v207
    %v209 = vadd.f32 %v206, %v207
    %v210 = vmax.f32 %v208, 0.0
    %v211 = vmax.f32 %v209, 0.0
    %v212 = vstv %s30
    %v213 = vmul.f32 %v212, %v149
    %v214 = vmul.f32 %v212, %v150
    %v215 = vstv %s31
    %v216 = vmul.f32 %v215, %v149
    %v217 = vmul.f32 %v215, %v150
    %v220 = vrot.slane %v216, 1
    %v221 = vrot.slane %v217, 1
    %v222 = vsel %vm159, %v220, %v221
    %v225 = vadd.f32 %v213, %v222
    %v226 = vadd.f32 %v214, %v221
    %v227 = vstv %s37
    %v228 = vadd.f32 %v225, %v227
    %v229 = vadd.f32 %v226, %v227
    %v230 = vmax.f32 %v228, 0.0
    %v231 = vmax.f32 %v229, 0.0
    %v232 = vstv %s32
    %v233 = vmul.f32 %v232, %v149
    %v234 = vmul.f32 %v232, %v150
    %v235 = vstv %s33
    %v236 = vmul.f32 %v235, %v149
    %v237 = vmul.f32 %v235, %v150
    %v240 = vrot.slane %v236, 1
    %v241 = vrot.slane %v237, 1
    %v242 = vsel %vm159, %v240, %v241
    %v245 = vadd.f32 %v233, %v242
    %v246 = vadd.f32 %v234, %v241
    %v247 = vstv %s38
    %v248 = vadd.f32 %v245, %v247
    %v249 = vadd.f32 %v246, %v247
    %v250 = vmax.f32 %v248, 0.0
    %v251 = vmax.f32 %v249, 0.0
    %v252 = vstv %s39
    %v253 = vmul.f32 %v252, %v170
    %v254 = vmul.f32 %v252, %v171
    %v255 = vstv %s40
    %v256 = vmul.f32 %v255, %v170
    %v257 = vmul.f32 %v255, %v171
    %v260 = vrot.slane %v256, 1
    %v261 = vrot.slane %v257, 1
    %v262 = vsel %vm159, %v260, %v261
    %v265 = vadd.f32 %v253, %v262
    %v266 = vadd.f32 %v254, %v261
    %v267 = vstv %s41
    %v268 = vmul.f32 %v267, %v190
    %v269 = vmul.f32 %v267, %v191
    %v270 = vadd.f32 %v265, %v268
    %v271 = vadd.f32 %v266, %v269
    %v272 = vstv %s42
    %v273 = vmul.f32 %v272, %v190
    %v274 = vmul.f32 %v272, %v191
    %v277 = vrot.slane %v273, 1
    %v278 = vrot.slane %v274, 1
    %v279 = vsel %vm159, %v277, %v278
    %v282 = vadd.f32 %v270, %v279
    %v283 = vadd.f32 %v271, %v278
    %v284 = vstv %s43
    %v285 = vmul.f32 %v284, %v210
    %v286 = vmul.f32 %v284, %v211
    %v287 = vadd.f32 %v282, %v285
    %v288 = vadd.f32 %v283, %v286
    %v289 = vstv %s44
    %v290 = vmul.f32 %v289, %v210
    %v291 = vmul.f32 %v289, %v211
    %v294 = vrot.slane %v290, 1
    %v295 = vrot.slane %v291, 1
    %v296 = vsel %vm159, %v294, %v295
    %v299 = vadd.f32 %v287, %v296
    %v300 = vadd.f32 %v288, %v295
    %v301 = vstv %s45
    %v302 = vmul.f32 %v301, %v230
    %v303 = vmul.f32 %v301, %v231
    %v304 = vadd.f32 %v299, %v302
    %v305 = vadd.f32 %v300, %v303
    %v306 = vstv %s46
    %v307 = vmul.f32 %v306, %v230
    %v308 = vmul.f32 %v306, %v231
    %v311 = vrot.slane %v307, 1
    %v312 = vrot.slane %v308, 1
    %v313 = vsel %vm159, %v311, %v312
    %v316 = vadd.f32 %v304, %v313
    %v317 = vadd.f32 %v305, %v312
    %v318 = vstv %s47
    %v319 = vmul.f32 %v318, %v250
    %v320 = vmul.f32 %v318, %v251
    %v321 = vadd.f32 %v316, %v319
    %v322 = vadd.f32 %v317, %v320
    %v323 = vstv %s48
    %v324 = vmul.f32 %v323, %v250
    %v325 = vmul.f32 %v323, %v251
    %v328 = vrot.slane %v324, 1
    %v329 = vrot.slane %v325, 1
    %v330 = vsel %vm159, %v328, %v329
    %v333 = vadd.f32 %v321, %v330
    %v334 = vadd.f32 %v322, %v329
    %v335 = vstv %s139
    %v336 = vadd.f32 %v333, %v335
    %v337 = vadd.f32 %v334, %v335
    %v338 = vmax.f32 %v336, 0.0
    %v339 = vmax.f32 %v337, 0.0
    %340 = vst [vmem:[#allocation2] sm:$0xff] %v338
    %341 = vst [vmem:[#allocation2 + $0x8] sm:$0x3f] %v339
    %v342 = vstv %s49
    %v343 = vmul.f32 %v342, %v170
    %v344 = vmul.f32 %v342, %v171
    %v345 = vstv %s50
    %v346 = vmul.f32 %v345, %v170
    %v347 = vmul.f32 %v345, %v171
    %v350 = vrot.slane %v346, 1
    %v351 = vrot.slane %v347, 1
    %v352 = vsel %vm159, %v350, %v351
    %v355 = vadd.f32 %v343, %v352
    %v356 = vadd.f32 %v344, %v351
    %v357 = vstv %s51
    %v358 = vmul.f32 %v357, %v190
    %v359 = vmul.f32 %v357, %v191
    %v360 = vadd.f32 %v355, %v358
    %v361 = vadd.f32 %v356, %v359
    %v362 = vstv %s52
    %v363 = vmul.f32 %v362, %v190
    %v364 = vmul.f32 %v362, %v191
    %v367 = vrot.slane %v363, 1
    %v368 = vrot.slane %v364, 1
    %v369 = vsel %vm159, %v367, %v368
    %v372 = vadd.f32 %v360, %v369
    %v373 = vadd.f32 %v361, %v368
    %v374 = vstv %s53
    %v375 = vmul.f32 %v374, %v210
    %v376 = vmul.f32 %v374, %v211
    %v377 = vadd.f32 %v372, %v375
    %v378 = vadd.f32 %v373, %v376
    %v379 = vstv %s54
    %v380 = vmul.f32 %v379, %v210
    %v381 = vmul.f32 %v379, %v211
    %v384 = vrot.slane %v380, 1
    %v385 = vrot.slane %v381, 1
    %v386 = vsel %vm159, %v384, %v385
    %v389 = vadd.f32 %v377, %v386
    %v390 = vadd.f32 %v378, %v385
    %v391 = vstv %s55
    %v392 = vmul.f32 %v391, %v230
    %v393 = vmul.f32 %v391, %v231
    %v394 = vadd.f32 %v389, %v392
    %v395 = vadd.f32 %v390, %v393
    %v396 = vstv %s56
    %v397 = vmul.f32 %v396, %v230
    %v398 = vmul.f32 %v396, %v231
    %v401 = vrot.slane %v397, 1
    %v402 = vrot.slane %v398, 1
    %v403 = vsel %vm159, %v401, %v402
    %v406 = vadd.f32 %v394, %v403
    %v407 = vadd.f32 %v395, %v402
    %v408 = vstv %s57
    %v409 = vmul.f32 %v408, %v250
    %v410 = vmul.f32 %v408, %v251
    %v411 = vadd.f32 %v406, %v409
    %v412 = vadd.f32 %v407, %v410
    %v413 = vstv %s58
    %v414 = vmul.f32 %v413, %v250
    %v415 = vmul.f32 %v413, %v251
    %v418 = vrot.slane %v414, 1
    %v419 = vrot.slane %v415, 1
    %v420 = vsel %vm159, %v418, %v419
    %v423 = vadd.f32 %v411, %v420
    %v424 = vadd.f32 %v412, %v419
    %v425 = vstv %s140
    %v426 = vadd.f32 %v423, %v425
    %v427 = vadd.f32 %v424, %v425
    %v428 = vmax.f32 %v426, 0.0
    %v429 = vmax.f32 %v427, 0.0
    %430 = vst [vmem:[#allocation2 + $0xe] sm:$0xff] %v428
    %431 = vst [vmem:[#allocation2 + $0x16] sm:$0x3f] %v429
    %v432 = vstv %s59
    %v433 = vmul.f32 %v432, %v170
    %v434 = vmul.f32 %v432, %v171
    %v435 = vstv %s60
    %v436 = vmul.f32 %v435, %v170
    %v437 = vmul.f32 %v435, %v171
    %v440 = vrot.slane %v436, 1
    %v441 = vrot.slane %v437, 1
    %v442 = vsel %vm159, %v440, %v441
    %v445 = vadd.f32 %v433, %v442
    %v446 = vadd.f32 %v434, %v441
    %v447 = vstv %s61
    %v448 = vmul.f32 %v447, %v190
    %v449 = vmul.f32 %v447, %v191
    %v450 = vadd.f32 %v445, %v448
    %v451 = vadd.f32 %v446, %v449
    %v452 = vstv %s62
    %v453 = vmul.f32 %v452, %v190
    %v454 = vmul.f32 %v452, %v191
    %v457 = vrot.slane %v453, 1
    %v458 = vrot.slane %v454, 1
    %v459 = vsel %vm159, %v457, %v458
    %v462 = vadd.f32 %v450, %v459
    %v463 = vadd.f32 %v451, %v458
    %v464 = vstv %s63
    %v465 = vmul.f32 %v464, %v210
    %v466 = vmul.f32 %v464, %v211
    %v467 = vadd.f32 %v462, %v465
    %v468 = vadd.f32 %v463, %v466
    %v469 = vstv %s64
    %v470 = vmul.f32 %v469, %v210
    %v471 = vmul.f32 %v469, %v211
    %v474 = vrot.slane %v470, 1
    %v475 = vrot.slane %v471, 1
    %v476 = vsel %vm159, %v474, %v475
    %v479 = vadd.f32 %v467, %v476
    %v480 = vadd.f32 %v468, %v475
    %v481 = vstv %s65
    %v482 = vmul.f32 %v481, %v230
    %v483 = vmul.f32 %v481, %v231
    %v484 = vadd.f32 %v479, %v482
    %v485 = vadd.f32 %v480, %v483
    %v486 = vstv %s66
    %v487 = vmul.f32 %v486, %v230
    %v488 = vmul.f32 %v486, %v231
    %v491 = vrot.slane %v487, 1
    %v492 = vrot.slane %v488, 1
    %v493 = vsel %vm159, %v491, %v492
    %v496 = vadd.f32 %v484, %v493
    %v497 = vadd.f32 %v485, %v492
    %v498 = vstv %s67
    %v499 = vmul.f32 %v498, %v250
    %v500 = vmul.f32 %v498, %v251
    %v501 = vadd.f32 %v496, %v499
    %v502 = vadd.f32 %v497, %v500
    %v503 = vstv %s68
    %v504 = vmul.f32 %v503, %v250
    %v505 = vmul.f32 %v503, %v251
    %v508 = vrot.slane %v504, 1
    %v509 = vrot.slane %v505, 1
    %v510 = vsel %vm159, %v508, %v509
    %v513 = vadd.f32 %v501, %v510
    %v514 = vadd.f32 %v502, %v509
    %v515 = vstv %s141
    %v516 = vadd.f32 %v513, %v515
    %v517 = vadd.f32 %v514, %v515
    %v518 = vmax.f32 %v516, 0.0
    %v519 = vmax.f32 %v517, 0.0
    %520 = vst [vmem:[#allocation2 + $0x1c] sm:$0xff] %v518
    %521 = vst [vmem:[#allocation2 + $0x24] sm:$0x3f] %v519
    %v522 = vstv %s69
    %v523 = vmul.f32 %v522, %v170
    %v524 = vmul.f32 %v522, %v171
    %v525 = vstv %s70
    %v526 = vmul.f32 %v525, %v170
    %v527 = vmul.f32 %v525, %v171
    %v530 = vrot.slane %v526, 1
    %v531 = vrot.slane %v527, 1
    %v532 = vsel %vm159, %v530, %v531
    %v535 = vadd.f32 %v523, %v532
    %v536 = vadd.f32 %v524, %v531
    %v537 = vstv %s71
    %v538 = vmul.f32 %v537, %v190
    %v539 = vmul.f32 %v537, %v191
    %v540 = vadd.f32 %v535, %v538
    %v541 = vadd.f32 %v536, %v539
    %v542 = vstv %s72
    %v543 = vmul.f32 %v542, %v190
    %v544 = vmul.f32 %v542, %v191
    %v547 = vrot.slane %v543, 1
    %v548 = vrot.slane %v544, 1
    %v549 = vsel %vm159, %v547, %v548
    %v552 = vadd.f32 %v540, %v549
    %v553 = vadd.f32 %v541, %v548
    %v554 = vstv %s73
    %v555 = vmul.f32 %v554, %v210
    %v556 = vmul.f32 %v554, %v211
    %v557 = vadd.f32 %v552, %v555
    %v558 = vadd.f32 %v553, %v556
    %v559 = vstv %s74
    %v560 = vmul.f32 %v559, %v210
    %v561 = vmul.f32 %v559, %v211
    %v564 = vrot.slane %v560, 1
    %v565 = vrot.slane %v561, 1
    %v566 = vsel %vm159, %v564, %v565
    %v569 = vadd.f32 %v557, %v566
    %v570 = vadd.f32 %v558, %v565
    %v571 = vstv %s75
    %v572 = vmul.f32 %v571, %v230
    %v573 = vmul.f32 %v571, %v231
    %v574 = vadd.f32 %v569, %v572
    %v575 = vadd.f32 %v570, %v573
    %v576 = vstv %s76
    %v577 = vmul.f32 %v576, %v230
    %v578 = vmul.f32 %v576, %v231
    %v581 = vrot.slane %v577, 1
    %v582 = vrot.slane %v578, 1
    %v583 = vsel %vm159, %v581, %v582
    %v586 = vadd.f32 %v574, %v583
    %v587 = vadd.f32 %v575, %v582
    %v588 = vstv %s77
    %v589 = vmul.f32 %v588, %v250
    %v590 = vmul.f32 %v588, %v251
    %v591 = vadd.f32 %v586, %v589
    %v592 = vadd.f32 %v587, %v590
    %v593 = vstv %s78
    %v594 = vmul.f32 %v593, %v250
    %v595 = vmul.f32 %v593, %v251
    %v598 = vrot.slane %v594, 1
    %v599 = vrot.slane %v595, 1
    %v600 = vsel %vm159, %v598, %v599
    %v603 = vadd.f32 %v591, %v600
    %v604 = vadd.f32 %v592, %v599
    %v605 = vstv %s142
    %v606 = vadd.f32 %v603, %v605
    %v607 = vadd.f32 %v604, %v605
    %v608 = vmax.f32 %v606, 0.0
    %v609 = vmax.f32 %v607, 0.0
    %610 = vst [vmem:[#allocation2 + $0x2a] sm:$0xff] %v608
    %611 = vst [vmem:[#allocation2 + $0x32] sm:$0x3f] %v609
    %v612 = vstv %s79
    %v613 = vmul.f32 %v612, %v170
    %v614 = vmul.f32 %v612, %v171
    %v615 = vstv %s80
    %v616 = vmul.f32 %v615, %v170
    %v617 = vmul.f32 %v615, %v171
    %v620 = vrot.slane %v616, 1
    %v621 = vrot.slane %v617, 1
    %v622 = vsel %vm159, %v620, %v621
    %v625 = vadd.f32 %v613, %v622
    %v626 = vadd.f32 %v614, %v621
    %v627 = vstv %s81
    %v628 = vmul.f32 %v627, %v190
    %v629 = vmul.f32 %v627, %v191
    %v630 = vadd.f32 %v625, %v628
    %v631 = vadd.f32 %v626, %v629
    %v632 = vstv %s82
    %v633 = vmul.f32 %v632, %v190
    %v634 = vmul.f32 %v632, %v191
    %v637 = vrot.slane %v633, 1
    %v638 = vrot.slane %v634, 1
    %v639 = vsel %vm159, %v637, %v638
    %v642 = vadd.f32 %v630, %v639
    %v643 = vadd.f32 %v631, %v638
    %v644 = vstv %s83
    %v645 = vmul.f32 %v644, %v210
    %v646 = vmul.f32 %v644, %v211
    %v647 = vadd.f32 %v642, %v645
    %v648 = vadd.f32 %v643, %v646
    %v649 = vstv %s84
    %v650 = vmul.f32 %v649, %v210
    %v651 = vmul.f32 %v649, %v211
    %v654 = vrot.slane %v650, 1
    %v655 = vrot.slane %v651, 1
    %v656 = vsel %vm159, %v654, %v655
    %v659 = vadd.f32 %v647, %v656
    %v660 = vadd.f32 %v648, %v655
    %v661 = vstv %s85
    %v662 = vmul.f32 %v661, %v230
    %v663 = vmul.f32 %v661, %v231
    %v664 = vadd.f32 %v659, %v662
    %v665 = vadd.f32 %v660, %v663
    %v666 = vstv %s86
    %v667 = vmul.f32 %v666, %v230
    %v668 = vmul.f32 %v666, %v231
    %v671 = vrot.slane %v667, 1
    %v672 = vrot.slane %v668, 1
    %v673 = vsel %vm159, %v671, %v672
    %v676 = vadd.f32 %v664, %v673
    %v677 = vadd.f32 %v665, %v672
    %v678 = vstv %s87
    %v679 = vmul.f32 %v678, %v250
    %v680 = vmul.f32 %v678, %v251
    %v681 = vadd.f32 %v676, %v679
    %v682 = vadd.f32 %v677, %v680
    %v683 = vstv %s88
    %v684 = vmul.f32 %v683, %v250
    %v685 = vmul.f32 %v683, %v251
    %v688 = vrot.slane %v684, 1
    %v689 = vrot.slane %v685, 1
    %v690 = vsel %vm159, %v688, %v689
    %v693 = vadd.f32 %v681, %v690
    %v694 = vadd.f32 %v682, %v689
    %v695 = vstv %s143
    %v696 = vadd.f32 %v693, %v695
    %v697 = vadd.f32 %v694, %v695
    %v698 = vmax.f32 %v696, 0.0
    %v699 = vmax.f32 %v697, 0.0
    %700 = vst [vmem:[#allocation2 + $0x38] sm:$0xff] %v698
    %701 = vst [vmem:[#allocation2 + $0x40] sm:$0x3f] %v699
    %v702 = vstv %s89
    %v703 = vmul.f32 %v702, %v170
    %v704 = vmul.f32 %v702, %v171
    %v705 = vstv %s90
    %v706 = vmul.f32 %v705, %v170
    %v707 = vmul.f32 %v705, %v171
    %v710 = vrot.slane %v706, 1
    %v711 = vrot.slane %v707, 1
    %v712 = vsel %vm159, %v710, %v711
    %v715 = vadd.f32 %v703, %v712
    %v716 = vadd.f32 %v704, %v711
    %v717 = vstv %s91
    %v718 = vmul.f32 %v717, %v190
    %v719 = vmul.f32 %v717, %v191
    %v720 = vadd.f32 %v715, %v718
    %v721 = vadd.f32 %v716, %v719
    %v722 = vstv %s92
    %v723 = vmul.f32 %v722, %v190
    %v724 = vmul.f32 %v722, %v191
    %v727 = vrot.slane %v723, 1
    %v728 = vrot.slane %v724, 1
    %v729 = vsel %vm159, %v727, %v728
    %v732 = vadd.f32 %v720, %v729
    %v733 = vadd.f32 %v721, %v728
    %v734 = vstv %s93
    %v735 = vmul.f32 %v734, %v210
    %v736 = vmul.f32 %v734, %v211
    %v737 = vadd.f32 %v732, %v735
    %v738 = vadd.f32 %v733, %v736
    %v739 = vstv %s94
    %v740 = vmul.f32 %v739, %v210
    %v741 = vmul.f32 %v739, %v211
    %v744 = vrot.slane %v740, 1
    %v745 = vrot.slane %v741, 1
    %v746 = vsel %vm159, %v744, %v745
    %v749 = vadd.f32 %v737, %v746
    %v750 = vadd.f32 %v738, %v745
    %v751 = vstv %s95
    %v752 = vmul.f32 %v751, %v230
    %v753 = vmul.f32 %v751, %v231
    %v754 = vadd.f32 %v749, %v752
    %v755 = vadd.f32 %v750, %v753
    %v756 = vstv %s96
    %v757 = vmul.f32 %v756, %v230
    %v758 = vmul.f32 %v756, %v231
    %v761 = vrot.slane %v757, 1
    %v762 = vrot.slane %v758, 1
    %v763 = vsel %vm159, %v761, %v762
    %v766 = vadd.f32 %v754, %v763
    %v767 = vadd.f32 %v755, %v762
    %v768 = vstv %s97
    %v769 = vmul.f32 %v768, %v250
    %v770 = vmul.f32 %v768, %v251
    %v771 = vadd.f32 %v766, %v769
    %v772 = vadd.f32 %v767, %v770
    %v773 = vstv %s98
    %v774 = vmul.f32 %v773, %v250
    %v775 = vmul.f32 %v773, %v251
    %v778 = vrot.slane %v774, 1
    %v779 = vrot.slane %v775, 1
    %v780 = vsel %vm159, %v778, %v779
    %v783 = vadd.f32 %v771, %v780
    %v784 = vadd.f32 %v772, %v779
    %v785 = vstv %s144
    %v786 = vadd.f32 %v783, %v785
    %v787 = vadd.f32 %v784, %v785
    %v788 = vmax.f32 %v786, 0.0
    %v789 = vmax.f32 %v787, 0.0
    %790 = vst [vmem:[#allocation2 + $0x46] sm:$0xff] %v788
    %791 = vst [vmem:[#allocation2 + $0x4e] sm:$0x3f] %v789
    %v792 = vstv %s99
    %v793 = vmul.f32 %v792, %v170
    %v794 = vmul.f32 %v792, %v171
    %v795 = vstv %s100
    %v796 = vmul.f32 %v795, %v170
    %v797 = vmul.f32 %v795, %v171
    %v800 = vrot.slane %v796, 1
    %v801 = vrot.slane %v797, 1
    %v802 = vsel %vm159, %v800, %v801
    %v805 = vadd.f32 %v793, %v802
    %v806 = vadd.f32 %v794, %v801
    %v807 = vstv %s101
    %v808 = vmul.f32 %v807, %v190
    %v809 = vmul.f32 %v807, %v191
    %v810 = vadd.f32 %v805, %v808
    %v811 = vadd.f32 %v806, %v809
    %v812 = vstv %s102
    %v813 = vmul.f32 %v812, %v190
    %v814 = vmul.f32 %v812, %v191
    %v817 = vrot.slane %v813, 1
    %v818 = vrot.slane %v814, 1
    %v819 = vsel %vm159, %v817, %v818
    %v822 = vadd.f32 %v810, %v819
    %v823 = vadd.f32 %v811, %v818
    %v824 = vstv %s103
    %v825 = vmul.f32 %v824, %v210
    %v826 = vmul.f32 %v824, %v211
    %v827 = vadd.f32 %v822, %v825
    %v828 = vadd.f32 %v823, %v826
    %v829 = vstv %s104
    %v830 = vmul.f32 %v829, %v210
    %v831 = vmul.f32 %v829, %v211
    %v834 = vrot.slane %v830, 1
    %v835 = vrot.slane %v831, 1
    %v836 = vsel %vm159, %v834, %v835
    %v839 = vadd.f32 %v827, %v836
    %v840 = vadd.f32 %v828, %v835
    %v841 = vstv %s105
    %v842 = vmul.f32 %v841, %v230
    %v843 = vmul.f32 %v841, %v231
    %v844 = vadd.f32 %v839, %v842
    %v845 = vadd.f32 %v840, %v843
    %v846 = vstv %s106
    %v847 = vmul.f32 %v846, %v230
    %v848 = vmul.f32 %v846, %v231
    %v851 = vrot.slane %v847, 1
    %v852 = vrot.slane %v848, 1
    %v853 = vsel %vm159, %v851, %v852
    %v856 = vadd.f32 %v844, %v853
    %v857 = vadd.f32 %v845, %v852
    %v858 = vstv %s107
    %v859 = vmul.f32 %v858, %v250
    %v860 = vmul.f32 %v858, %v251
    %v861 = vadd.f32 %v856, %v859
    %v862 = vadd.f32 %v857, %v860
    %v863 = vstv %s108
    %v864 = vmul.f32 %v863, %v250
    %v865 = vmul.f32 %v863, %v251
    %v868 = vrot.slane %v864, 1
    %v869 = vrot.slane %v865, 1
    %v870 = vsel %vm159, %v868, %v869
    %v873 = vadd.f32 %v861, %v870
    %v874 = vadd.f32 %v862, %v869
    %v875 = vstv %s145
    %v876 = vadd.f32 %v873, %v875
    %v877 = vadd.f32 %v874, %v875
    %v878 = vmax.f32 %v876, 0.0
    %v879 = vmax.f32 %v877, 0.0
    %880 = vst [vmem:[#allocation2 + $0x54] sm:$0xff] %v878
    %881 = vst [vmem:[#allocation2 + $0x5c] sm:$0x3f] %v879
    %v882 = vstv %s109
    %v883 = vmul.f32 %v882, %v170
    %v884 = vmul.f32 %v882, %v171
    %v885 = vstv %s110
    %v886 = vmul.f32 %v885, %v170
    %v887 = vmul.f32 %v885, %v171
    %v890 = vrot.slane %v886, 1
    %v891 = vrot.slane %v887, 1
    %v892 = vsel %vm159, %v890, %v891
    %v895 = vadd.f32 %v883, %v892
    %v896 = vadd.f32 %v884, %v891
    %v897 = vstv %s111
    %v898 = vmul.f32 %v897, %v190
    %v899 = vmul.f32 %v897, %v191
    %v900 = vadd.f32 %v895, %v898
    %v901 = vadd.f32 %v896, %v899
    %v902 = vstv %s112
    %v903 = vmul.f32 %v902, %v190
    %v904 = vmul.f32 %v902, %v191
    %v907 = vrot.slane %v903, 1
    %v908 = vrot.slane %v904, 1
    %v909 = vsel %vm159, %v907, %v908
    %v912 = vadd.f32 %v900, %v909
    %v913 = vadd.f32 %v901, %v908
    %v914 = vstv %s113
    %v915 = vmul.f32 %v914, %v210
    %v916 = vmul.f32 %v914, %v211
    %v917 = vadd.f32 %v912, %v915
    %v918 = vadd.f32 %v913, %v916
    %v919 = vstv %s114
    %v920 = vmul.f32 %v919, %v210
    %v921 = vmul.f32 %v919, %v211
    %v924 = vrot.slane %v920, 1
    %v925 = vrot.slane %v921, 1
    %v926 = vsel %vm159, %v924, %v925
    %v929 = vadd.f32 %v917, %v926
    %v930 = vadd.f32 %v918, %v925
    %v931 = vstv %s115
    %v932 = vmul.f32 %v931, %v230
    %v933 = vmul.f32 %v931, %v231
    %v934 = vadd.f32 %v929, %v932
    %v935 = vadd.f32 %v930, %v933
    %v936 = vstv %s116
    %v937 = vmul.f32 %v936, %v230
    %v938 = vmul.f32 %v936, %v231
    %v941 = vrot.slane %v937, 1
    %v942 = vrot.slane %v938, 1
    %v943 = vsel %vm159, %v941, %v942
    %v946 = vadd.f32 %v934, %v943
    %v947 = vadd.f32 %v935, %v942
    %v948 = vstv %s117
    %v949 = vmul.f32 %v948, %v250
    %v950 = vmul.f32 %v948, %v251
    %v951 = vadd.f32 %v946, %v949
    %v952 = vadd.f32 %v947, %v950
    %v953 = vstv %s118
    %v954 = vmul.f32 %v953, %v250
    %v955 = vmul.f32 %v953, %v251
    %v958 = vrot.slane %v954, 1
    %v959 = vrot.slane %v955, 1
    %v960 = vsel %vm159, %v958, %v959
    %v963 = vadd.f32 %v951, %v960
    %v964 = vadd.f32 %v952, %v959
    %v965 = vstv %s146
    %v966 = vadd.f32 %v963, %v965
    %v967 = vadd.f32 %v964, %v965
    %v968 = vmax.f32 %v966, 0.0
    %v969 = vmax.f32 %v967, 0.0
    %970 = vst [vmem:[#allocation2 + $0x62] sm:$0xff] %v968
    %971 = vst [vmem:[#allocation2 + $0x6a] sm:$0x3f] %v969
    %v972 = vstv %s119
    %v973 = vmul.f32 %v972, %v170
    %v974 = vmul.f32 %v972, %v171
    %v975 = vstv %s120
    %v976 = vmul.f32 %v975, %v170
    %v977 = vmul.f32 %v975, %v171
    %v980 = vrot.slane %v976, 1
    %v981 = vrot.slane %v977, 1
    %v982 = vsel %vm159, %v980, %v981
    %v985 = vadd.f32 %v973, %v982
    %v986 = vadd.f32 %v974, %v981
    %v987 = vstv %s121
    %v988 = vmul.f32 %v987, %v190
    %v989 = vmul.f32 %v987, %v191
    %v990 = vadd.f32 %v985, %v988
    %v991 = vadd.f32 %v986, %v989
    %v992 = vstv %s122
    %v993 = vmul.f32 %v992, %v190
    %v994 = vmul.f32 %v992, %v191
    %v997 = vrot.slane %v993, 1
    %v998 = vrot.slane %v994, 1
    %v999 = vsel %vm159, %v997, %v998
    %v1002 = vadd.f32 %v990, %v999
    %v1003 = vadd.f32 %v991, %v998
    %v1004 = vstv %s123
    %v1005 = vmul.f32 %v1004, %v210
    %v1006 = vmul.f32 %v1004, %v211
    %v1007 = vadd.f32 %v1002, %v1005
    %v1008 = vadd.f32 %v1003, %v1006
    %v1009 = vstv %s124
    %v1010 = vmul.f32 %v1009, %v210
    %v1011 = vmul.f32 %v1009, %v211
    %v1014 = vrot.slane %v1010, 1
    %v1015 = vrot.slane %v1011, 1
    %v1016 = vsel %vm159, %v1014, %v1015
    %v1019 = vadd.f32 %v1007, %v1016
    %v1020 = vadd.f32 %v1008, %v1015
    %v1021 = vstv %s125
    %v1022 = vmul.f32 %v1021, %v230
    %v1023 = vmul.f32 %v1021, %v231
    %v1024 = vadd.f32 %v1019, %v1022
    %v1025 = vadd.f32 %v1020, %v1023
    %v1026 = vstv %s126
    %v1027 = vmul.f32 %v1026, %v230
    %v1028 = vmul.f32 %v1026, %v231
    %v1031 = vrot.slane %v1027, 1
    %v1032 = vrot.slane %v1028, 1
    %v1033 = vsel %vm159, %v1031, %v1032
    %v1036 = vadd.f32 %v1024, %v1033
    %v1037 = vadd.f32 %v1025, %v1032
    %v1038 = vstv %s127
    %v1039 = vmul.f32 %v1038, %v250
    %v1040 = vmul.f32 %v1038, %v251
    %v1041 = vadd.f32 %v1036, %v1039
    %v1042 = vadd.f32 %v1037, %v1040
    %v1043 = vstv %s128
    %v1044 = vmul.f32 %v1043, %v250
    %v1045 = vmul.f32 %v1043, %v251
    %v1048 = vrot.slane %v1044, 1
    %v1049 = vrot.slane %v1045, 1
    %v1050 = vsel %vm159, %v1048, %v1049
    %v1053 = vadd.f32 %v1041, %v1050
    %v1054 = vadd.f32 %v1042, %v1049
    %v1055 = vstv %s147
    %v1056 = vadd.f32 %v1053, %v1055
    %v1057 = vadd.f32 %v1054, %v1055
    %v1058 = vmax.f32 %v1056, 0.0
    %v1059 = vmax.f32 %v1057, 0.0
    %1060 = vst [vmem:[#allocation2 + $0x70] sm:$0xff] %v1058
    %1061 = vst [vmem:[#allocation2 + $0x78] sm:$0x3f] %v1059
    %v1062 = vstv %s129
    %v1063 = vmul.f32 %v1062, %v170
    %v1064 = vmul.f32 %v1062, %v171
    %v1065 = vstv %s130
    %v1066 = vmul.f32 %v1065, %v170
    %v1067 = vmul.f32 %v1065, %v171
    %v1070 = vrot.slane %v1066, 1
    %v1071 = vrot.slane %v1067, 1
    %v1072 = vsel %vm159, %v1070, %v1071
    %v1075 = vadd.f32 %v1063, %v1072
    %v1076 = vadd.f32 %v1064, %v1071
    %v1077 = vstv %s131
    %v1078 = vmul.f32 %v1077, %v190
    %v1079 = vmul.f32 %v1077, %v191
    %v1080 = vadd.f32 %v1075, %v1078
    %v1081 = vadd.f32 %v1076, %v1079
    %v1082 = vstv %s132
    %v1083 = vmul.f32 %v1082, %v190
    %v1084 = vmul.f32 %v1082, %v191
    %v1087 = vrot.slane %v1083, 1
    %v1088 = vrot.slane %v1084, 1
    %v1089 = vsel %vm159, %v1087, %v1088
    %v1092 = vadd.f32 %v1080, %v1089
    %v1093 = vadd.f32 %v1081, %v1088
    %v1094 = vstv %s133
    %v1095 = vmul.f32 %v1094, %v210
    %v1096 = vmul.f32 %v1094, %v211
    %v1097 = vadd.f32 %v1092, %v1095
    %v1098 = vadd.f32 %v1093, %v1096
    %v1099 = vstv %s134
    %v1100 = vmul.f32 %v1099, %v210
    %v1101 = vmul.f32 %v1099, %v211
    %v1104 = vrot.slane %v1100, 1
    %v1105 = vrot.slane %v1101, 1
    %v1106 = vsel %vm159, %v1104, %v1105
    %v1109 = vadd.f32 %v1097, %v1106
    %v1110 = vadd.f32 %v1098, %v1105
    %v1111 = vstv %s135
    %v1112 = vmul.f32 %v1111, %v230
    %v1113 = vmul.f32 %v1111, %v231
    %v1114 = vadd.f32 %v1109, %v1112
    %v1115 = vadd.f32 %v1110, %v1113
    %v1116 = vstv %s136
    %v1117 = vmul.f32 %v1116, %v230
    %v1118 = vmul.f32 %v1116, %v231
    %v1121 = vrot.slane %v1117, 1
    %v1122 = vrot.slane %v1118, 1
    %v1123 = vsel %vm159, %v1121, %v1122
    %v1126 = vadd.f32 %v1114, %v1123
    %v1127 = vadd.f32 %v1115, %v1122
    %v1128 = vstv %s137
    %v1129 = vmul.f32 %v1128, %v250
    %v1130 = vmul.f32 %v1128, %v251
    %v1131 = vadd.f32 %v1126, %v1129
    %v1132 = vadd.f32 %v1127, %v1130
    %v1133 = vstv %s138
    %v1134 = vmul.f32 %v1133, %v250
    %v1135 = vmul.f32 %v1133, %v251
    %v1138 = vrot.slane %v1134, 1
    %v1139 = vrot.slane %v1135, 1
    %v1140 = vsel %vm159, %v1138, %v1139
    %v1143 = vadd.f32 %v1131, %v1140
    %v1144 = vadd.f32 %v1132, %v1139
    %v1145 = vstv %s148
    %v1146 = vadd.f32 %v1143, %v1145
    %v1147 = vadd.f32 %v1144, %v1145
    %v1148 = vmax.f32 %v1146, 0.0
    %v1149 = vmax.f32 %v1147, 0.0
    %1150 = vst [vmem:[#allocation2 + $0x7e] sm:$0xff] %v1148
    %1151 = vst [vmem:[#allocation2 + $0x86] sm:$0x3f] %v1149
    %v1152 = vld [vmem:[#allocation2] sm:$0xff]
    %v1153 = vld [vmem:[#allocation2 + $0x8] sm:$0xff]
    %v1154 = vld [vmem:[#allocation2 + $0x10] sm:$0xff]
    %v1155 = vld [vmem:[#allocation2 + $0x18] sm:$0xff]
    %v1156 = vld [vmem:[#allocation2 + $0x20] sm:$0xff]
    %v1157 = vld [vmem:[#allocation2 + $0x28] sm:$0xff]
    %v1158 = vld [vmem:[#allocation2 + $0x30] sm:$0xff]
    %v1159 = vld [vmem:[#allocation2 + $0x38] sm:$0xff]
    %v1160 = vld [vmem:[#allocation2 + $0x40] sm:$0xff]
    %v1161 = vld [vmem:[#allocation2 + $0x48] sm:$0xff]
    %v1162 = vld [vmem:[#allocation2 + $0x50] sm:$0xff]
    %v1163 = vld [vmem:[#allocation2 + $0x58] sm:$0xff]
    %v1164 = vld [vmem:[#allocation2 + $0x60] sm:$0xff]
    %v1165 = vld [vmem:[#allocation2 + $0x68] sm:$0xff]
    %v1166 = vld [vmem:[#allocation2 + $0x70] sm:$0xff]
    %v1167 = vld [vmem:[#allocation2 + $0x78] sm:$0xff]
    %1168 = vxpose.xlu0.b32.start [1/16] %v1152, 128
    %1169 = vxpose.xlu0.b32.cont [2/16] %v1153, 128
    %1170 = vxpose.xlu0.b32.cont [3/16] %v1154, 128
    %1171 = vxpose.xlu0.b32.cont [4/16] %v1155, 128
    %1172 = vxpose.xlu0.b32.cont [5/16] %v1156, 128
    %1173 = vxpose.xlu0.b32.cont [6/16] %v1157, 128
    %1174 = vxpose.xlu0.b32.cont [7/16] %v1158, 128
    %1175 = vxpose.xlu0.b32.cont [8/16] %v1159, 128
    %1176 = vxpose.xlu0.b32.cont [9/16] %v1160, 128
    %1177 = vxpose.xlu0.b32.cont [10/16] %v1161, 128
    %1178 = vxpose.xlu0.b32.cont [11/16] %v1162, 128
    %1179 = vxpose.xlu0.b32.cont [12/16] %v1163, 128
    %1180 = vxpose.xlu0.b32.cont [13/16] %v1164, 128
    %1181 = vxpose.xlu0.b32.cont [14/16] %v1165, 128
    %1182 = vxpose.xlu0.b32.cont [15/16] %v1166, 128
    %1183 = vxpose.xlu0.b32.end [16/16] %v1167, 128
    %v1184 = vpop.trf.xlu0
    %v1185 = vpop.trf.xlu0
    %v1186 = vpop.trf.xlu0
    %v1187 = vpop.trf.xlu0
    %v1188 = vpop.trf.xlu0
    %v1189 = vpop.trf.xlu0
    %v1190 = vpop.trf.xlu0
    %v1191 = vpop.trf.xlu0
    %v1192 = vpop.trf.xlu0
    %v1193 = vpop.trf.xlu0
    %v1194 = vpop.trf.xlu0
    %v1195 = vpop.trf.xlu0
    %v1196 = vpop.trf.xlu0
    %v1197 = vpop.trf.xlu0
    %v1198 = vpop.trf.xlu0
    %v1199 = vpop.trf.xlu0
    %1200 = vst [vmem:[%s2] sm:$0xff] %v1184
    %1201 = vst [vmem:[%s2 + $0x10] sm:$0xff] %v1185
    %1202 = vst [vmem:[%s2 + $0x20] sm:$0xff] %v1186
    %1203 = vst [vmem:[%s2 + $0x30] sm:$0xff] %v1187
    %1204 = vst [vmem:[%s2 + $0x40] sm:$0xff] %v1188
    %1205 = vst [vmem:[%s2 + $0x50] sm:$0xff] %v1189
    %1206 = vst [vmem:[%s2 + $0x60] sm:$0xff] %v1190
    %1207 = vst [vmem:[%s2 + $0x70] sm:$0xff] %v1191
    %1208 = vst [vmem:[%s2 + $0x80] sm:$0xff] %v1192
    %1209 = vst [vmem:[%s2 + $0x90] sm:$0xff] %v1193
    %1210 = vst [vmem:[%s2 + $0xa0] sm:$0xff] %v1194
    %1211 = vst [vmem:[%s2 + $0xb0] sm:$0xff] %v1195
    %1212 = vst [vmem:[%s2 + $0xc0] sm:$0xff] %v1196
    %1213 = vst [vmem:[%s2 + $0xd0] sm:$0xff] %v1197
    %1214 = vst [vmem:[%s2 + $0xe0] sm:$0xff] %v1198
    %1215 = vst [vmem:[%s2 + $0xf0] sm:$0xff] %v1199
    %v1216 = vld [vmem:[#allocation2 + $0x80] sm:$0xff]
    %v1217 = vld [vmem:[#allocation2 + $0x88] sm:$0xff]
    %1218 = vxpose.xlu0.b32.start [1/16] %v1216, 128
    %1219 = vxpose.xlu0.b32.cont [2/16] %v1217, 128
    %1220 = vxpose.xlu0.b32.cont [3/16] 0.0, 128
    %1221 = vxpose.xlu0.b32.cont [4/16] 0.0, 128
    %1222 = vxpose.xlu0.b32.cont [5/16] 0.0, 128
    %1223 = vxpose.xlu0.b32.cont [6/16] 0.0, 128
    %1224 = vxpose.xlu0.b32.cont [7/16] 0.0, 128
    %1225 = vxpose.xlu0.b32.cont [8/16] 0.0, 128
    %1226 = vxpose.xlu0.b32.cont [9/16] 0.0, 128
    %1227 = vxpose.xlu0.b32.cont [10/16] 0.0, 128
    %1228 = vxpose.xlu0.b32.cont [11/16] 0.0, 128
    %1229 = vxpose.xlu0.b32.cont [12/16] 0.0, 128
    %1230 = vxpose.xlu0.b32.cont [13/16] 0.0, 128
    %1231 = vxpose.xlu0.b32.cont [14/16] 0.0, 128
    %1232 = vxpose.xlu0.b32.cont [15/16] 0.0, 128
    %1233 = vxpose.xlu0.b32.end [16/16] 0.0, 128
    %v1234 = vpop.trf.xlu0
    %v1235 = vpop.trf.xlu0
    %v1236 = vpop.trf.xlu0
    %v1237 = vpop.trf.xlu0
    %v1238 = vpop.trf.xlu0
    %v1239 = vpop.trf.xlu0
    %v1240 = vpop.trf.xlu0
    %v1241 = vpop.trf.xlu0
    %v1242 = vpop.trf.xlu0
    %v1243 = vpop.trf.xlu0
    %v1244 = vpop.trf.xlu0
    %v1245 = vpop.trf.xlu0
    %v1246 = vpop.trf.xlu0
    %v1247 = vpop.trf.xlu0
    %v1248 = vpop.trf.xlu0
    %v1249 = vpop.trf.xlu0
    %vm1250 = vcmask 97280
    %1251 = vst.msk [vmem:[%s2 + $0x8] sm:$0xff] %vm1250, %v1234
    %1252 = vst.msk [vmem:[%s2 + $0x18] sm:$0xff] %vm1250, %v1235
    %1253 = vst.msk [vmem:[%s2 + $0x28] sm:$0xff] %vm1250, %v1236
    %1254 = vst.msk [vmem:[%s2 + $0x38] sm:$0xff] %vm1250, %v1237
    %1255 = vst.msk [vmem:[%s2 + $0x48] sm:$0xff] %vm1250, %v1238
    %1256 = vst.msk [vmem:[%s2 + $0x58] sm:$0xff] %vm1250, %v1239
    %1257 = vst.msk [vmem:[%s2 + $0x68] sm:$0xff] %vm1250, %v1240
    %1258 = vst.msk [vmem:[%s2 + $0x78] sm:$0xff] %vm1250, %v1241
    %1259 = vst.msk [vmem:[%s2 + $0x88] sm:$0xff] %vm1250, %v1242
    %1260 = vst.msk [vmem:[%s2 + $0x98] sm:$0xff] %vm1250, %v1243
    %1261 = vst.msk [vmem:[%s2 + $0xa8] sm:$0xff] %vm1250, %v1244
    %1262 = vst.msk [vmem:[%s2 + $0xb8] sm:$0xff] %vm1250, %v1245
    %1263 = vst.msk [vmem:[%s2 + $0xc8] sm:$0xff] %vm1250, %v1246
    %1264 = vst.msk [vmem:[%s2 + $0xd8] sm:$0xff] %vm1250, %v1247
    %1265 = vst.msk [vmem:[%s2 + $0xe8] sm:$0xff] %vm1250, %v1248
    %1266 = vst.msk [vmem:[%s2 + $0xf8] sm:$0xff] %vm1250, %v1249
    // Predicated region
    $region14: #{conv_dueling_forward.1} parent=1 // pred_check
      _
    $region15: #{conv_dueling_forward.1} parent=1 // pred_check_branch
      %1268 = sbr.rel (0) target = $region17
    $region16: #{conv_dueling_forward.1} parent=1 // pred_region
      _
    $region17: #{conv_dueling_forward.1} parent=1 // pred_fallthru
      _
    // Predicated region
    $region18: #{conv_dueling_forward.1} parent=1 // pred_check
      _
    $region19: #{conv_dueling_forward.1} parent=1 // pred_check_branch
      %1270 = sbr.rel (0) target = $region21
    $region20: #{conv_dueling_forward.1} parent=1 // pred_region
      _
    $region21: #{conv_dueling_forward.1} parent=1 // pred_fallthru
      _
    %1271 = vsyncpa [#allocation4], 1

</llo_original>
